<compile_context>
chip_gen: v5e
topology: v5e:2x2
jax: 0.10.0
libtpu: 0.0.40
codegen_flags: <defaults>
</compile_context>

<pallas_src>
import jax
import jax.numpy as jnp
from jax.experimental import pallas as pl
from jax.experimental.pallas import tpu as pltpu


def _rodrigues_components(vx, vy, vz):
    """so(3) exp-map, expanded per rotation-matrix entry.

    R = cos(t) I + sin(t) K(u) + (1 - cos(t)) u u^T,   u = v / ||v||,  t = ||v||.
    Follows the PyTorch `rodrigues` (divides by ||v|| with no epsilon; ||v||=0 has
    measure zero for Gaussian samples).  Inputs broadcast; returns 9 arrays (row-major).
    """
    theta = jnp.sqrt(vx * vx + vy * vy + vz * vz)
    inv_t = 1.0 / theta
    ux, uy, uz = vx * inv_t, vy * inv_t, vz * inv_t
    s = jnp.sin(theta)
    c = jnp.cos(theta)
    t = 1.0 - c
    return (c + t * ux * ux, t * ux * uy - s * uz, t * ux * uz + s * uy,
            t * ux * uy + s * uz, c + t * uy * uy, t * uy * uz - s * ux,
            t * ux * uz - s * uy, t * uy * uz + s * ux, c + t * uz * uz)


def so3_reparam_kernel(xt_ref, w_ref, b_ref, eps_ref, z_ref):
    # Fused projection on the MXU: rows 0..2 -> Lie-algebra mean, rows 3..5 -> pre-sigma
    # (rows 6..7 are zero padding).  Shapes: [8, D] @ [D, TB] -> [8, TB].
    proj = jnp.dot(w_ref[...], xt_ref[...],
                   preferred_element_type=jnp.float32) + b_ref[...]

    # Zero-mean Gaussian reparameterization: v = softplus(Ws x + bs) * eps.
    sx = jax.nn.softplus(proj[3:4])          # [1, TB]
    sy = jax.nn.softplus(proj[4:5])
    sz = jax.nn.softplus(proj[5:6])
    vx = sx * eps_ref[0]                     # [N, TB]
    vy = sy * eps_ref[1]
    vz = sz * eps_ref[2]

    # Exp-map the mean algebra vector (once per batch tile) and the samples.
    m = _rodrigues_components(proj[0:1], proj[1:2], proj[2:3])   # 9 x [1, TB]
    v = _rodrigues_components(vx, vy, vz)                        # 9 x [N, TB]

    # z = mu_lie @ v_lie :  Z_ij = sum_k M_ik V_kj, elementwise over lanes (batch).
    for i in range(3):
        for j in range(3):
            zij = (m[3 * i + 0] * v[0 * 3 + j] +
                   m[3 * i + 1] * v[1 * 3 + j] +
                   m[3 * i + 2] * v[2 * 3 + j])                  # [N, TB]
            z_ref[3 * i + j] = zij.astype(z_ref.dtype)


def so3_reparameterize(x, wm, bm, ws, bs, eps, *, tb=512):
    """SO(3) reparameterized sampling.

    x   : [B, D]      features
    wm  : [3, D], bm : [3]   mean-algebra Linear (torch layout: weight [out, in])
    ws  : [3, D], bs : [3]   sigma Linear
    eps : [N, B, 3]   standard-normal noise
    returns z : [N, B, 3, 3]
    """
    B, D = x.shape
    N = eps.shape[0]
    assert eps.shape == (N, B, 3)

    tb = min(tb, B)
    assert B % tb == 0, "batch must be divisible by tile size"
    assert tb % 128 == 0 or tb == B, "lane tile must be a multiple of 128 (or full B)"

    # Fused projection weights: rows 0..2 mean algebra, rows 3..5 pre-sigma, rows 6..7 pad.
    w_cat = jnp.concatenate([wm, ws, jnp.zeros((2, D), wm.dtype)], axis=0)          # [8, D]
    b_cat = jnp.concatenate([bm, bs, jnp.zeros((2,), bm.dtype)], axis=0)[:, None]   # [8, 1]

    # Lane-dense layout plumbing (batch on the lane axis).
    xt = x.T                                   # [D, B]
    eps_t = jnp.transpose(eps, (2, 0, 1))      # [3, N, B]

    zk = pl.pallas_call(
        so3_reparam_kernel,
        out_shape=jax.ShapeDtypeStruct((9, N, B), jnp.float32),
        grid_spec=pltpu.PrefetchScalarGridSpec(
            num_scalar_prefetch=0,
            grid=(B // tb,),
            in_specs=[
                pl.BlockSpec((D, tb), lambda i: (0, i)),        # x^T tile
                pl.BlockSpec((8, D), lambda i: (0, 0)),         # fused weights
                pl.BlockSpec((8, 1), lambda i: (0, 0)),         # fused biases
                pl.BlockSpec((3, N, tb), lambda i: (0, 0, i)),  # eps tile (lane-dense)
            ],
            out_specs=pl.BlockSpec((9, N, tb), lambda i: (0, 0, i)),
        ),
        compiler_params=pltpu.CompilerParams(
            dimension_semantics=("parallel",)),
    )(xt, w_cat, b_cat, eps_t)

    # [9, N, B] -> (N, B, 3, 3) (torch convention).
    return jnp.transpose(zk.reshape(3, 3, N, B), (2, 3, 0, 1))


# ---------------------------------------------------------------------------
# Pure-JAX reference mirroring the PyTorch code (rodrigues via K, K@K).
# ---------------------------------------------------------------------------
def _rodrigues_ref(v):
    theta = jnp.linalg.norm(v, axis=-1, keepdims=True)
    u = v / theta
    ux, uy, uz = u[..., 0], u[..., 1], u[..., 2]
    zero = jnp.zeros_like(ux)
    K = jnp.stack([
        jnp.stack([zero, -uz, uy], axis=-1),
        jnp.stack([uz, zero, -ux], axis=-1),
        jnp.stack([-uy, ux, zero], axis=-1),
    ], axis=-2)
    eye = jnp.eye(3, dtype=v.dtype)
    s = jnp.sin(theta)[..., None]
    c = jnp.cos(theta)[..., None]
    return eye + s * K + (1.0 - c) * (K @ K)


def reference(x, wm, bm, ws, bs, eps):
    mean_alg = x @ wm.T + bm                       # [B, 3]
    sigma = jax.nn.softplus(x @ ws.T + bs)         # [B, 3]
    v = sigma[None] * eps                          # [N, B, 3]
    mu_lie = _rodrigues_ref(mean_alg)              # [B, 3, 3]
    v_lie = _rodrigues_ref(v)                      # [N, B, 3, 3]
    return jnp.einsum('bij,nbjk->nbik', mu_lie, v_lie)


if __name__ == "__main__":
    B, D, N = 256, 32, 4                  # batch, input_dim, n samples (z_dim fixed to 3)
    key = jax.random.PRNGKey(0)
    k = jax.random.split(key, 6)

    x = jax.random.normal(k[0], (B, D), jnp.float32)

    # Torch-style Linear init: uniform(-1/sqrt(D), 1/sqrt(D)).
    bound = 1.0 / (D ** 0.5)
    wm = jax.random.uniform(k[1], (3, D), jnp.float32, -bound, bound)
    bm = jax.random.uniform(k[2], (3,), jnp.float32, -bound, bound)
    ws = jax.random.uniform(k[3], (3, D), jnp.float32, -bound, bound)
    bs = jax.random.uniform(k[4], (3,), jnp.float32, -bound, bound)

    # Standard-normal noise for the reparameterization trick.
    eps = jax.random.normal(k[5], (N, B, 3), jnp.float32)

    # tb=128 keeps >=2 parallel grid iterations (v7x megacore); default tb=512 for big B.
    z = so3_reparameterize(x, wm, bm, ws, bs, eps, tb=128)
    z = jax.block_until_ready(z)

    ref = reference(x, wm, bm, ws, bs, eps)
    assert z.shape == (N, B, 3, 3)
    # Slightly loose tolerance: kernel expands R = cI + sK + (1-c)uu^T while the reference
    # computes I + sK + (1-c)K@K; 1/||v|| mildly amplifies matmul rounding differences.
    max_err = float(jnp.max(jnp.abs(z - ref)))
    assert jnp.allclose(z, ref, atol=1e-4, rtol=1e-4), f"mismatch vs reference (max err {max_err})"
    # Sanity: outputs are rotation matrices (orthonormal).
    gram = jnp.einsum('nbij,nbkj->nbik', z, z)
    assert jnp.allclose(gram, jnp.eye(3, dtype=z.dtype), atol=1e-3)
    print("KERNEL_OK")
</pallas_src>

<mosaic_0001>
module attributes {stable_mosaic.version = 11 : i64} {
  func.func @so3_reparam_kernel(%arg0: i32, %arg1: memref<32x128xf32, #tpu.memory_space<vmem>>, %arg2: memref<8x32xf32, #tpu.memory_space<vmem>>, %arg3: memref<8x1xf32, #tpu.memory_space<vmem>>, %arg4: memref<3x4x128xf32, #tpu.memory_space<vmem>>, %arg5: memref<9x4x128xf32, #tpu.memory_space<vmem>>) attributes {dimension_semantics = [#tpu.dimension_semantics<parallel>], iteration_bounds = array<i64: 2>, scalar_prefetch = 0 : i64, scratch_operands = 0 : i64, tpu.core_type = #tpu.core_type<tc>, window_params = [{transform_indices = @transform_0, window_bounds = array<i64: 32, 128>}, {pipeline_mode = #tpu.pipeline_mode<synchronous>, transform_indices = @transform_1, window_bounds = array<i64: 8, 32>}, {pipeline_mode = #tpu.pipeline_mode<synchronous>, transform_indices = @transform_2, window_bounds = array<i64: 8, 1>}, {transform_indices = @transform_3, window_bounds = array<i64: 3, 4, 128>}, {transform_indices = @transform_4, window_bounds = array<i64: 9, 4, 128>}]} {
    %c0 = arith.constant 0 : index
    %c0_0 = arith.constant 0 : index
    %0 = vector.load %arg2[%c0, %c0_0] : memref<8x32xf32, #tpu.memory_space<vmem>>, vector<8x32xf32>
    %c0_1 = arith.constant 0 : index
    %c0_2 = arith.constant 0 : index
    %1 = vector.load %arg1[%c0_1, %c0_2] : memref<32x128xf32, #tpu.memory_space<vmem>>, vector<32x128xf32>
    %cst = arith.constant dense<0.000000e+00> : vector<8x128xf32>
    %2 = tpu.matmul %0, %1, %cst {dimension_numbers = #tpu.dot_dimension_numbers<[1], [0], [0], [1], [0, 0, 1, 1], [], []>} : vector<8x32xf32>, vector<32x128xf32>, vector<8x128xf32> -> vector<8x128xf32>
    %c0_3 = arith.constant 0 : index
    %c0_4 = arith.constant 0 : index
    %3 = vector.load %arg3[%c0_3, %c0_4] : memref<8x1xf32, #tpu.memory_space<vmem>>, vector<8x1xf32>
    %4 = vector.broadcast %3 : vector<8x1xf32> to vector<8x128xf32>
    %5 = arith.addf %2, %4 : vector<8x128xf32>
    %6 = vector.extract_strided_slice %5 {offsets = [3, 0], sizes = [1, 128], strides = [1, 1]} : vector<8x128xf32> to vector<1x128xf32>
    %cst_5 = arith.constant 0.000000e+00 : f32
    %7 = vector.broadcast %cst_5 : f32 to vector<1x128xf32>
    %8 = arith.maximumf %6, %7 : vector<1x128xf32>
    %9 = vector.broadcast %cst_5 : f32 to vector<1x128xf32>
    %10 = arith.subf %6, %9 : vector<1x128xf32>
    %11 = arith.cmpf one, %10, %10 : vector<1x128xf32>
    %12 = vector.broadcast %cst_5 : f32 to vector<1x128xf32>
    %13 = arith.addf %6, %12 : vector<1x128xf32>
    %14 = math.absf %10 : vector<1x128xf32>
    %cst_6 = arith.constant 0.000000e+00 : f32
    %15 = vector.broadcast %cst_6 : f32 to vector<1x128xf32>
    %16 = arith.subf %15, %14 : vector<1x128xf32>
    %17 = math.exp %16 : vector<1x128xf32>
    %18 = math.log1p %17 : vector<1x128xf32>
    %19 = arith.addf %8, %18 : vector<1x128xf32>
    %20 = arith.select %11, %13, %19 : vector<1x128xi1>, vector<1x128xf32>
    %21 = vector.extract_strided_slice %5 {offsets = [4, 0], sizes = [1, 128], strides = [1, 1]} : vector<8x128xf32> to vector<1x128xf32>
    %cst_7 = arith.constant 0.000000e+00 : f32
    %22 = vector.broadcast %cst_7 : f32 to vector<1x128xf32>
    %23 = arith.maximumf %21, %22 : vector<1x128xf32>
    %24 = vector.broadcast %cst_7 : f32 to vector<1x128xf32>
    %25 = arith.subf %21, %24 : vector<1x128xf32>
    %26 = arith.cmpf one, %25, %25 : vector<1x128xf32>
    %27 = vector.broadcast %cst_7 : f32 to vector<1x128xf32>
    %28 = arith.addf %21, %27 : vector<1x128xf32>
    %29 = math.absf %25 : vector<1x128xf32>
    %cst_8 = arith.constant 0.000000e+00 : f32
    %30 = vector.broadcast %cst_8 : f32 to vector<1x128xf32>
    %31 = arith.subf %30, %29 : vector<1x128xf32>
    %32 = math.exp %31 : vector<1x128xf32>
    %33 = math.log1p %32 : vector<1x128xf32>
    %34 = arith.addf %23, %33 : vector<1x128xf32>
    %35 = arith.select %26, %28, %34 : vector<1x128xi1>, vector<1x128xf32>
    %36 = vector.extract_strided_slice %5 {offsets = [5, 0], sizes = [1, 128], strides = [1, 1]} : vector<8x128xf32> to vector<1x128xf32>
    %cst_9 = arith.constant 0.000000e+00 : f32
    %37 = vector.broadcast %cst_9 : f32 to vector<1x128xf32>
    %38 = arith.maximumf %36, %37 : vector<1x128xf32>
    %39 = vector.broadcast %cst_9 : f32 to vector<1x128xf32>
    %40 = arith.subf %36, %39 : vector<1x128xf32>
    %41 = arith.cmpf one, %40, %40 : vector<1x128xf32>
    %42 = vector.broadcast %cst_9 : f32 to vector<1x128xf32>
    %43 = arith.addf %36, %42 : vector<1x128xf32>
    %44 = math.absf %40 : vector<1x128xf32>
    %cst_10 = arith.constant 0.000000e+00 : f32
    %45 = vector.broadcast %cst_10 : f32 to vector<1x128xf32>
    %46 = arith.subf %45, %44 : vector<1x128xf32>
    %47 = math.exp %46 : vector<1x128xf32>
    %48 = math.log1p %47 : vector<1x128xf32>
    %49 = arith.addf %38, %48 : vector<1x128xf32>
    %50 = arith.select %41, %43, %49 : vector<1x128xi1>, vector<1x128xf32>
    %c0_11 = arith.constant 0 : index
    %c0_12 = arith.constant 0 : index
    %c0_13 = arith.constant 0 : index
    %51 = vector.load %arg4[%c0_11, %c0_12, %c0_13] : memref<3x4x128xf32, #tpu.memory_space<vmem>>, vector<1x4x128xf32>
    %52 = vector.shape_cast %51 : vector<1x4x128xf32> to vector<4x128xf32>
    %53 = vector.broadcast %20 : vector<1x128xf32> to vector<4x128xf32>
    %54 = arith.mulf %53, %52 : vector<4x128xf32>
    %c1 = arith.constant 1 : index
    %c0_14 = arith.constant 0 : index
    %c0_15 = arith.constant 0 : index
    %55 = vector.load %arg4[%c1, %c0_14, %c0_15] : memref<3x4x128xf32, #tpu.memory_space<vmem>>, vector<1x4x128xf32>
    %56 = vector.shape_cast %55 : vector<1x4x128xf32> to vector<4x128xf32>
    %57 = vector.broadcast %35 : vector<1x128xf32> to vector<4x128xf32>
    %58 = arith.mulf %57, %56 : vector<4x128xf32>
    %c2 = arith.constant 2 : index
    %c0_16 = arith.constant 0 : index
    %c0_17 = arith.constant 0 : index
    %59 = vector.load %arg4[%c2, %c0_16, %c0_17] : memref<3x4x128xf32, #tpu.memory_space<vmem>>, vector<1x4x128xf32>
    %60 = vector.shape_cast %59 : vector<1x4x128xf32> to vector<4x128xf32>
    %61 = vector.broadcast %50 : vector<1x128xf32> to vector<4x128xf32>
    %62 = arith.mulf %61, %60 : vector<4x128xf32>
    %63 = vector.extract_strided_slice %5 {offsets = [0, 0], sizes = [1, 128], strides = [1, 1]} : vector<8x128xf32> to vector<1x128xf32>
    %64 = vector.extract_strided_slice %5 {offsets = [1, 0], sizes = [1, 128], strides = [1, 1]} : vector<8x128xf32> to vector<1x128xf32>
    %65 = vector.extract_strided_slice %5 {offsets = [2, 0], sizes = [1, 128], strides = [1, 1]} : vector<8x128xf32> to vector<1x128xf32>
    %66 = arith.mulf %63, %63 : vector<1x128xf32>
    %67 = arith.mulf %64, %64 : vector<1x128xf32>
    %68 = arith.addf %66, %67 : vector<1x128xf32>
    %69 = arith.mulf %65, %65 : vector<1x128xf32>
    %70 = arith.addf %68, %69 : vector<1x128xf32>
    %71 = math.sqrt %70 : vector<1x128xf32>
    %cst_18 = arith.constant 1.000000e+00 : f32
    %72 = vector.broadcast %cst_18 : f32 to vector<1x128xf32>
    %73 = arith.divf %72, %71 : vector<1x128xf32>
    %74 = arith.mulf %63, %73 : vector<1x128xf32>
    %75 = arith.mulf %64, %73 : vector<1x128xf32>
    %76 = arith.mulf %65, %73 : vector<1x128xf32>
    %77 = math.sin %71 : vector<1x128xf32>
    %78 = math.cos %71 : vector<1x128xf32>
    %cst_19 = arith.constant 1.000000e+00 : f32
    %79 = vector.broadcast %cst_19 : f32 to vector<1x128xf32>
    %80 = arith.subf %79, %78 : vector<1x128xf32>
    %81 = arith.mulf %80, %74 : vector<1x128xf32>
    %82 = arith.mulf %81, %74 : vector<1x128xf32>
    %83 = arith.addf %78, %82 : vector<1x128xf32>
    %84 = arith.mulf %80, %74 : vector<1x128xf32>
    %85 = arith.mulf %84, %75 : vector<1x128xf32>
    %86 = arith.mulf %77, %76 : vector<1x128xf32>
    %87 = arith.subf %85, %86 : vector<1x128xf32>
    %88 = arith.mulf %80, %74 : vector<1x128xf32>
    %89 = arith.mulf %88, %76 : vector<1x128xf32>
    %90 = arith.mulf %77, %75 : vector<1x128xf32>
    %91 = arith.addf %89, %90 : vector<1x128xf32>
    %92 = arith.mulf %80, %74 : vector<1x128xf32>
    %93 = arith.mulf %92, %75 : vector<1x128xf32>
    %94 = arith.mulf %77, %76 : vector<1x128xf32>
    %95 = arith.addf %93, %94 : vector<1x128xf32>
    %96 = arith.mulf %80, %75 : vector<1x128xf32>
    %97 = arith.mulf %96, %75 : vector<1x128xf32>
    %98 = arith.addf %78, %97 : vector<1x128xf32>
    %99 = arith.mulf %80, %75 : vector<1x128xf32>
    %100 = arith.mulf %99, %76 : vector<1x128xf32>
    %101 = arith.mulf %77, %74 : vector<1x128xf32>
    %102 = arith.subf %100, %101 : vector<1x128xf32>
    %103 = arith.mulf %80, %74 : vector<1x128xf32>
    %104 = arith.mulf %103, %76 : vector<1x128xf32>
    %105 = arith.mulf %77, %75 : vector<1x128xf32>
    %106 = arith.subf %104, %105 : vector<1x128xf32>
    %107 = arith.mulf %80, %75 : vector<1x128xf32>
    %108 = arith.mulf %107, %76 : vector<1x128xf32>
    %109 = arith.mulf %77, %74 : vector<1x128xf32>
    %110 = arith.addf %108, %109 : vector<1x128xf32>
    %111 = arith.mulf %80, %76 : vector<1x128xf32>
    %112 = arith.mulf %111, %76 : vector<1x128xf32>
    %113 = arith.addf %78, %112 : vector<1x128xf32>
    %114 = arith.mulf %54, %54 : vector<4x128xf32>
    %115 = arith.mulf %58, %58 : vector<4x128xf32>
    %116 = arith.addf %114, %115 : vector<4x128xf32>
    %117 = arith.mulf %62, %62 : vector<4x128xf32>
    %118 = arith.addf %116, %117 : vector<4x128xf32>
    %119 = math.sqrt %118 : vector<4x128xf32>
    %cst_20 = arith.constant 1.000000e+00 : f32
    %120 = vector.broadcast %cst_20 : f32 to vector<4x128xf32>
    %121 = arith.divf %120, %119 : vector<4x128xf32>
    %122 = arith.mulf %54, %121 : vector<4x128xf32>
    %123 = arith.mulf %58, %121 : vector<4x128xf32>
    %124 = arith.mulf %62, %121 : vector<4x128xf32>
    %125 = math.sin %119 : vector<4x128xf32>
    %126 = math.cos %119 : vector<4x128xf32>
    %cst_21 = arith.constant 1.000000e+00 : f32
    %127 = vector.broadcast %cst_21 : f32 to vector<4x128xf32>
    %128 = arith.subf %127, %126 : vector<4x128xf32>
    %129 = arith.mulf %128, %122 : vector<4x128xf32>
    %130 = arith.mulf %129, %122 : vector<4x128xf32>
    %131 = arith.addf %126, %130 : vector<4x128xf32>
    %132 = arith.mulf %128, %122 : vector<4x128xf32>
    %133 = arith.mulf %132, %123 : vector<4x128xf32>
    %134 = arith.mulf %125, %124 : vector<4x128xf32>
    %135 = arith.subf %133, %134 : vector<4x128xf32>
    %136 = arith.mulf %128, %122 : vector<4x128xf32>
    %137 = arith.mulf %136, %124 : vector<4x128xf32>
    %138 = arith.mulf %125, %123 : vector<4x128xf32>
    %139 = arith.addf %137, %138 : vector<4x128xf32>
    %140 = arith.mulf %128, %122 : vector<4x128xf32>
    %141 = arith.mulf %140, %123 : vector<4x128xf32>
    %142 = arith.mulf %125, %124 : vector<4x128xf32>
    %143 = arith.addf %141, %142 : vector<4x128xf32>
    %144 = arith.mulf %128, %123 : vector<4x128xf32>
    %145 = arith.mulf %144, %123 : vector<4x128xf32>
    %146 = arith.addf %126, %145 : vector<4x128xf32>
    %147 = arith.mulf %128, %123 : vector<4x128xf32>
    %148 = arith.mulf %147, %124 : vector<4x128xf32>
    %149 = arith.mulf %125, %122 : vector<4x128xf32>
    %150 = arith.subf %148, %149 : vector<4x128xf32>
    %151 = arith.mulf %128, %122 : vector<4x128xf32>
    %152 = arith.mulf %151, %124 : vector<4x128xf32>
    %153 = arith.mulf %125, %123 : vector<4x128xf32>
    %154 = arith.subf %152, %153 : vector<4x128xf32>
    %155 = arith.mulf %128, %123 : vector<4x128xf32>
    %156 = arith.mulf %155, %124 : vector<4x128xf32>
    %157 = arith.mulf %125, %122 : vector<4x128xf32>
    %158 = arith.addf %156, %157 : vector<4x128xf32>
    %159 = arith.mulf %128, %124 : vector<4x128xf32>
    %160 = arith.mulf %159, %124 : vector<4x128xf32>
    %161 = arith.addf %126, %160 : vector<4x128xf32>
    %162 = vector.broadcast %83 : vector<1x128xf32> to vector<4x128xf32>
    %163 = arith.mulf %162, %131 : vector<4x128xf32>
    %164 = vector.broadcast %87 : vector<1x128xf32> to vector<4x128xf32>
    %165 = arith.mulf %164, %143 : vector<4x128xf32>
    %166 = arith.addf %163, %165 : vector<4x128xf32>
    %167 = vector.broadcast %91 : vector<1x128xf32> to vector<4x128xf32>
    %168 = arith.mulf %167, %154 : vector<4x128xf32>
    %169 = arith.addf %166, %168 : vector<4x128xf32>
    %c0_22 = arith.constant 0 : index
    %c0_23 = arith.constant 0 : index
    %c0_24 = arith.constant 0 : index
    %170 = vector.load %arg5[%c0_22, %c0_23, %c0_24] : memref<9x4x128xf32, #tpu.memory_space<vmem>>, vector<1x4x128xf32>
    %171 = vector.shape_cast %170 : vector<1x4x128xf32> to vector<4x128xf32>
    %172 = vector.shape_cast %169 : vector<4x128xf32> to vector<1x4x128xf32>
    tpu.vector_store %arg5[%c0_22, %c0_23, %c0_24], %172 {strides = array<i32>} : memref<9x4x128xf32, #tpu.memory_space<vmem>>, vector<1x4x128xf32>,
    %173 = vector.broadcast %83 : vector<1x128xf32> to vector<4x128xf32>
    %174 = arith.mulf %173, %135 : vector<4x128xf32>
    %175 = vector.broadcast %87 : vector<1x128xf32> to vector<4x128xf32>
    %176 = arith.mulf %175, %146 : vector<4x128xf32>
    %177 = arith.addf %174, %176 : vector<4x128xf32>
    %178 = vector.broadcast %91 : vector<1x128xf32> to vector<4x128xf32>
    %179 = arith.mulf %178, %158 : vector<4x128xf32>
    %180 = arith.addf %177, %179 : vector<4x128xf32>
    %c1_25 = arith.constant 1 : index
    %c0_26 = arith.constant 0 : index
    %c0_27 = arith.constant 0 : index
    %181 = vector.load %arg5[%c1_25, %c0_26, %c0_27] : memref<9x4x128xf32, #tpu.memory_space<vmem>>, vector<1x4x128xf32>
    %182 = vector.shape_cast %181 : vector<1x4x128xf32> to vector<4x128xf32>
    %183 = vector.shape_cast %180 : vector<4x128xf32> to vector<1x4x128xf32>
    tpu.vector_store %arg5[%c1_25, %c0_26, %c0_27], %183 {strides = array<i32>} : memref<9x4x128xf32, #tpu.memory_space<vmem>>, vector<1x4x128xf32>,
    %184 = vector.broadcast %83 : vector<1x128xf32> to vector<4x128xf32>
    %185 = arith.mulf %184, %139 : vector<4x128xf32>
    %186 = vector.broadcast %87 : vector<1x128xf32> to vector<4x128xf32>
    %187 = arith.mulf %186, %150 : vector<4x128xf32>
    %188 = arith.addf %185, %187 : vector<4x128xf32>
    %189 = vector.broadcast %91 : vector<1x128xf32> to vector<4x128xf32>
    %190 = arith.mulf %189, %161 : vector<4x128xf32>
    %191 = arith.addf %188, %190 : vector<4x128xf32>
    %c2_28 = arith.constant 2 : index
    %c0_29 = arith.constant 0 : index
    %c0_30 = arith.constant 0 : index
    %192 = vector.load %arg5[%c2_28, %c0_29, %c0_30] : memref<9x4x128xf32, #tpu.memory_space<vmem>>, vector<1x4x128xf32>
    %193 = vector.shape_cast %192 : vector<1x4x128xf32> to vector<4x128xf32>
    %194 = vector.shape_cast %191 : vector<4x128xf32> to vector<1x4x128xf32>
    tpu.vector_store %arg5[%c2_28, %c0_29, %c0_30], %194 {strides = array<i32>} : memref<9x4x128xf32, #tpu.memory_space<vmem>>, vector<1x4x128xf32>,
    %195 = vector.broadcast %95 : vector<1x128xf32> to vector<4x128xf32>
    %196 = arith.mulf %195, %131 : vector<4x128xf32>
    %197 = vector.broadcast %98 : vector<1x128xf32> to vector<4x128xf32>
    %198 = arith.mulf %197, %143 : vector<4x128xf32>
    %199 = arith.addf %196, %198 : vector<4x128xf32>
    %200 = vector.broadcast %102 : vector<1x128xf32> to vector<4x128xf32>
    %201 = arith.mulf %200, %154 : vector<4x128xf32>
    %202 = arith.addf %199, %201 : vector<4x128xf32>
    %c3 = arith.constant 3 : index
    %c0_31 = arith.constant 0 : index
    %c0_32 = arith.constant 0 : index
    %203 = vector.load %arg5[%c3, %c0_31, %c0_32] : memref<9x4x128xf32, #tpu.memory_space<vmem>>, vector<1x4x128xf32>
    %204 = vector.shape_cast %203 : vector<1x4x128xf32> to vector<4x128xf32>
    %205 = vector.shape_cast %202 : vector<4x128xf32> to vector<1x4x128xf32>
    tpu.vector_store %arg5[%c3, %c0_31, %c0_32], %205 {strides = array<i32>} : memref<9x4x128xf32, #tpu.memory_space<vmem>>, vector<1x4x128xf32>,
    %206 = vector.broadcast %95 : vector<1x128xf32> to vector<4x128xf32>
    %207 = arith.mulf %206, %135 : vector<4x128xf32>
    %208 = vector.broadcast %98 : vector<1x128xf32> to vector<4x128xf32>
    %209 = arith.mulf %208, %146 : vector<4x128xf32>
    %210 = arith.addf %207, %209 : vector<4x128xf32>
    %211 = vector.broadcast %102 : vector<1x128xf32> to vector<4x128xf32>
    %212 = arith.mulf %211, %158 : vector<4x128xf32>
    %213 = arith.addf %210, %212 : vector<4x128xf32>
    %c4 = arith.constant 4 : index
    %c0_33 = arith.constant 0 : index
    %c0_34 = arith.constant 0 : index
    %214 = vector.load %arg5[%c4, %c0_33, %c0_34] : memref<9x4x128xf32, #tpu.memory_space<vmem>>, vector<1x4x128xf32>
    %215 = vector.shape_cast %214 : vector<1x4x128xf32> to vector<4x128xf32>
    %216 = vector.shape_cast %213 : vector<4x128xf32> to vector<1x4x128xf32>
    tpu.vector_store %arg5[%c4, %c0_33, %c0_34], %216 {strides = array<i32>} : memref<9x4x128xf32, #tpu.memory_space<vmem>>, vector<1x4x128xf32>,
    %217 = vector.broadcast %95 : vector<1x128xf32> to vector<4x128xf32>
    %218 = arith.mulf %217, %139 : vector<4x128xf32>
    %219 = vector.broadcast %98 : vector<1x128xf32> to vector<4x128xf32>
    %220 = arith.mulf %219, %150 : vector<4x128xf32>
    %221 = arith.addf %218, %220 : vector<4x128xf32>
    %222 = vector.broadcast %102 : vector<1x128xf32> to vector<4x128xf32>
    %223 = arith.mulf %222, %161 : vector<4x128xf32>
    %224 = arith.addf %221, %223 : vector<4x128xf32>
    %c5 = arith.constant 5 : index
    %c0_35 = arith.constant 0 : index
    %c0_36 = arith.constant 0 : index
    %225 = vector.load %arg5[%c5, %c0_35, %c0_36] : memref<9x4x128xf32, #tpu.memory_space<vmem>>, vector<1x4x128xf32>
    %226 = vector.shape_cast %225 : vector<1x4x128xf32> to vector<4x128xf32>
    %227 = vector.shape_cast %224 : vector<4x128xf32> to vector<1x4x128xf32>
    tpu.vector_store %arg5[%c5, %c0_35, %c0_36], %227 {strides = array<i32>} : memref<9x4x128xf32, #tpu.memory_space<vmem>>, vector<1x4x128xf32>,
    %228 = vector.broadcast %106 : vector<1x128xf32> to vector<4x128xf32>
    %229 = arith.mulf %228, %131 : vector<4x128xf32>
    %230 = vector.broadcast %110 : vector<1x128xf32> to vector<4x128xf32>
    %231 = arith.mulf %230, %143 : vector<4x128xf32>
    %232 = arith.addf %229, %231 : vector<4x128xf32>
    %233 = vector.broadcast %113 : vector<1x128xf32> to vector<4x128xf32>
    %234 = arith.mulf %233, %154 : vector<4x128xf32>
    %235 = arith.addf %232, %234 : vector<4x128xf32>
    %c6 = arith.constant 6 : index
    %c0_37 = arith.constant 0 : index
    %c0_38 = arith.constant 0 : index
    %236 = vector.load %arg5[%c6, %c0_37, %c0_38] : memref<9x4x128xf32, #tpu.memory_space<vmem>>, vector<1x4x128xf32>
    %237 = vector.shape_cast %236 : vector<1x4x128xf32> to vector<4x128xf32>
    %238 = vector.shape_cast %235 : vector<4x128xf32> to vector<1x4x128xf32>
    tpu.vector_store %arg5[%c6, %c0_37, %c0_38], %238 {strides = array<i32>} : memref<9x4x128xf32, #tpu.memory_space<vmem>>, vector<1x4x128xf32>,
    %239 = vector.broadcast %106 : vector<1x128xf32> to vector<4x128xf32>
    %240 = arith.mulf %239, %135 : vector<4x128xf32>
    %241 = vector.broadcast %110 : vector<1x128xf32> to vector<4x128xf32>
    %242 = arith.mulf %241, %146 : vector<4x128xf32>
    %243 = arith.addf %240, %242 : vector<4x128xf32>
    %244 = vector.broadcast %113 : vector<1x128xf32> to vector<4x128xf32>
    %245 = arith.mulf %244, %158 : vector<4x128xf32>
    %246 = arith.addf %243, %245 : vector<4x128xf32>
    %c7 = arith.constant 7 : index
    %c0_39 = arith.constant 0 : index
    %c0_40 = arith.constant 0 : index
    %247 = vector.load %arg5[%c7, %c0_39, %c0_40] : memref<9x4x128xf32, #tpu.memory_space<vmem>>, vector<1x4x128xf32>
    %248 = vector.shape_cast %247 : vector<1x4x128xf32> to vector<4x128xf32>
    %249 = vector.shape_cast %246 : vector<4x128xf32> to vector<1x4x128xf32>
    tpu.vector_store %arg5[%c7, %c0_39, %c0_40], %249 {strides = array<i32>} : memref<9x4x128xf32, #tpu.memory_space<vmem>>, vector<1x4x128xf32>,
    %250 = vector.broadcast %106 : vector<1x128xf32> to vector<4x128xf32>
    %251 = arith.mulf %250, %139 : vector<4x128xf32>
    %252 = vector.broadcast %110 : vector<1x128xf32> to vector<4x128xf32>
    %253 = arith.mulf %252, %150 : vector<4x128xf32>
    %254 = arith.addf %251, %253 : vector<4x128xf32>
    %255 = vector.broadcast %113 : vector<1x128xf32> to vector<4x128xf32>
    %256 = arith.mulf %255, %161 : vector<4x128xf32>
    %257 = arith.addf %254, %256 : vector<4x128xf32>
    %c8 = arith.constant 8 : index
    %c0_41 = arith.constant 0 : index
    %c0_42 = arith.constant 0 : index
    %258 = vector.load %arg5[%c8, %c0_41, %c0_42] : memref<9x4x128xf32, #tpu.memory_space<vmem>>, vector<1x4x128xf32>
    %259 = vector.shape_cast %258 : vector<1x4x128xf32> to vector<4x128xf32>
    %260 = vector.shape_cast %257 : vector<4x128xf32> to vector<1x4x128xf32>
    tpu.vector_store %arg5[%c8, %c0_41, %c0_42], %260 {strides = array<i32>} : memref<9x4x128xf32, #tpu.memory_space<vmem>>, vector<1x4x128xf32>,
    return
  }
  func.func @transform_0(%arg0: i32) -> (i32, i32) {
    %c0_i32 = arith.constant 0 : i32
    %c0_i32_0 = arith.constant 0 : i32
    return %c0_i32, %arg0 : i32, i32
  }
  func.func @transform_1(%arg0: i32) -> (i32, i32) {
    %c0_i32 = arith.constant 0 : i32
    %c0_i32_0 = arith.constant 0 : i32
    %c0_i32_1 = arith.constant 0 : i32
    return %c0_i32, %c0_i32_0 : i32, i32
  }
  func.func @transform_2(%arg0: i32) -> (i32, i32) {
    %c0_i32 = arith.constant 0 : i32
    %c0_i32_0 = arith.constant 0 : i32
    %c0_i32_1 = arith.constant 0 : i32
    return %c0_i32, %c0_i32_0 : i32, i32
  }
  func.func @transform_3(%arg0: i32) -> (i32, i32, i32) {
    %c0_i32 = arith.constant 0 : i32
    %c0_i32_0 = arith.constant 0 : i32
    %c0_i32_1 = arith.constant 0 : i32
    return %c0_i32, %c0_i32_0, %arg0 : i32, i32, i32
  }
  func.func @transform_4(%arg0: i32) -> (i32, i32, i32) {
    %c0_i32 = arith.constant 0 : i32
    %c0_i32_0 = arith.constant 0 : i32
    %c0_i32_1 = arith.constant 0 : i32
    return %c0_i32, %c0_i32_0, %arg0 : i32, i32, i32
  }
}

</mosaic_0001>

<llo_original>
// kernel: tpu_custom_call.1
$region0: #{tpu_custom_call.1}
  #allocation0 [shape = 'u32[]', space=smem, size = 0x4, offset = 0x4, fixed_abs, tag = 'smem constant byte address 0x4 - core index']
  #allocation1 [shape = 'u32[72,128]{1,0:T(1,128)}', space=vmem, size = 0x9000, scoped, tag = 'internal scratch']
  %s0 = inlined_call_operand.hbm [shape: f32[32,256], index: 0, kind: input, shape index: {}]
  %s1 = inlined_call_operand.vmem [shape: f32[8,32], index: 1, kind: input, shape index: {}]
  %s2 = inlined_call_operand.vmem [shape: f32[8,1], index: 2, kind: input, shape index: {}]
  %s3 = inlined_call_operand.hbm [shape: f32[3,4,256], index: 3, kind: input, shape index: {}]
  %s4 = inlined_call_operand.hbm [shape: f32[9,4,256], index: 4, kind: output, shape index: {}]
  %s5 = sld [smem:[#allocation0]]
  $region57: #{tpu_custom_call.1} parent=0
    _
  %s7 = ssub.s32 1, %s5
  %s8 = scalar_select 0, %s7, %s5
  $region1: #{tpu_custom_call.1} parent=0
    #allocation2 [shape = 'u8[32768]{0}', space=vmem, size = 0x8000, scoped, tag = 'input window, operand 0']
    #allocation3 [shape = 's32[2]{0}', space=sflag, size = 0x8, scoped, tag = 'scoped memory for tpu_custom_call.1']
    #allocation4 [shape = 's32[2]{0}', space=sflag, size = 0x8, scoped, tag = 'scoped memory for tpu_custom_call.1']
    #allocation5 [shape = 'u8[12288]{0}', space=vmem, size = 0x3000, scoped, tag = 'input window, operand 3']
    #allocation6 [shape = 's32[2]{0}', space=sflag, size = 0x8, scoped, tag = 'scoped memory for tpu_custom_call.1']
    #allocation7 [shape = 'u8[36864]{0}', space=vmem, size = 0x9000, scoped, tag = 'output window, operand 0']
    %9 = vsyncpa [#allocation3], 0
    %s10 = scalar_lea.sflag [#allocation3], 1
    %11 = vsyncpa %s10, 0
    %12 = vsyncpa [#allocation6], 0
    %s13 = scalar_lea.sflag [#allocation6], 1
    %14 = vsyncpa %s13, 0
    %15 = vsyncpa [#allocation4], 0
    %s16 = scalar_lea.sflag [#allocation4], 1
    %17 = vsyncpa %s16, 0
    loop: start=0, step=1, limit=4
    $region2: #{tpu_custom_call.1} parent=1 // loop_pre_header
      _
    $region3: #{tpu_custom_call.1} parent=1 // loop_header
      %s19 = sphi 0, %s23
      %p20 = scmp.ge.s32.totalorder %s19, 4
      %s29 = sphi 0, %s31
      %s32 = sphi 0, %s29
      %s33 = sphi 0, %s32
      %s49 = sphi 0, %s33
      %s53 = sphi 0, %s53
      %s55 = sphi 0, %s53
      %s56 = sphi 0, %s55
      %s70 = sphi 0, %s56
      %s74 = sphi 0, %s74
      %s76 = sphi 0, %s74
      %s77 = sphi 0, %s76
      %s91 = sphi 0, %s77
      %s97 = sphi 0, %s99
      %s100 = sphi 0, %s97
      %s101 = sphi 0, %s100
      %s117 = sphi 0, %s101
      %s123 = sphi 0, %s125
      %s126 = sphi 0, %s123
      %s127 = sphi 0, %s126
      %s143 = sphi 0, %s127
    $region4: #{tpu_custom_call.1} parent=1 // loop_header_branch
      %22 = sbr.rel (%p20) target = $region8
    $region5: #{tpu_custom_call.1} parent=1 // loop_body
      %s24 = ssub.s32 %s19, 1
      %s25 = ssub.s32 %s19, 2
      %s26 = sadd.s32 %s19, 1
      %s27 = ssub.s32 %s19, %s26
      %p28 = scmp.eq.s32.totalorder %s27, 0
      %s30 = sadd.s32 %s29, 1
      %s31 = scalar_select %p28, %s29, %s30
      %p34 = pneg %p28
      %p35 = scmp.eq.s32.totalorder %s19, 1
      %p36 = por %p34, %p35
      %p37 = scmp.ne.s32.totalorder %s29, %s32
      %p38 = scmp.eq.s32.totalorder %s19, 0
      %p39 = por %p37, %p38
      %p40 = scmp.ne.s32.totalorder %s29, %s32
      %p41 = scmp.eq.s32.totalorder %s24, 1
      %p42 = por %p40, %p41
      %p43 = scmp.ne.s32.totalorder %s32, %s33
      %p44 = scmp.eq.s32.totalorder %s24, 0
      %p45 = por %p43, %p44
      %p46 = scmp.ne.s32.totalorder %s32, %s33
      %p47 = scmp.eq.s32.totalorder %s25, 1
      %p48 = por %p46, %p47
      %p50 = scmp.ne.s32.totalorder %s33, %s49
      %p51 = scmp.eq.s32.totalorder %s25, 0
      %p52 = por %p50, %p51
      %s54 = sadd.s32 %s53, 1
      %p57 = scmp.eq.s32.totalorder %s19, 1
      %p58 = scmp.ne.s32.totalorder %s53, %s55
      %p59 = scmp.eq.s32.totalorder %s19, 0
      %p60 = por %p58, %p59
      %p61 = scmp.ne.s32.totalorder %s53, %s55
      %p62 = scmp.eq.s32.totalorder %s24, 1
      %p63 = por %p61, %p62
      %p64 = scmp.ne.s32.totalorder %s55, %s56
      %p65 = scmp.eq.s32.totalorder %s24, 0
      %p66 = por %p64, %p65
      %p67 = scmp.ne.s32.totalorder %s55, %s56
      %p68 = scmp.eq.s32.totalorder %s25, 1
      %p69 = por %p67, %p68
      %p71 = scmp.ne.s32.totalorder %s56, %s70
      %p72 = scmp.eq.s32.totalorder %s25, 0
      %p73 = por %p71, %p72
      %s75 = sadd.s32 %s74, 1
      %p78 = scmp.eq.s32.totalorder %s19, 1
      %p79 = scmp.ne.s32.totalorder %s74, %s76
      %p80 = scmp.eq.s32.totalorder %s19, 0
      %p81 = por %p79, %p80
      %p82 = scmp.ne.s32.totalorder %s74, %s76
      %p83 = scmp.eq.s32.totalorder %s24, 1
      %p84 = por %p82, %p83
      %p85 = scmp.ne.s32.totalorder %s76, %s77
      %p86 = scmp.eq.s32.totalorder %s24, 0
      %p87 = por %p85, %p86
      %p88 = scmp.ne.s32.totalorder %s76, %s77
      %p89 = scmp.eq.s32.totalorder %s25, 1
      %p90 = por %p88, %p89
      %p92 = scmp.ne.s32.totalorder %s77, %s91
      %p93 = scmp.eq.s32.totalorder %s25, 0
      %p94 = por %p92, %p93
      %s95 = ssub.s32 %s19, %s26
      %p96 = scmp.eq.s32.totalorder %s95, 0
      %s98 = sadd.s32 %s97, 1
      %s99 = scalar_select %p96, %s97, %s98
      %p102 = pneg %p96
      %p103 = scmp.eq.s32.totalorder %s19, 1
      %p104 = por %p102, %p103
      %p105 = scmp.ne.s32.totalorder %s97, %s100
      %p106 = scmp.eq.s32.totalorder %s19, 0
      %p107 = por %p105, %p106
      %p108 = scmp.ne.s32.totalorder %s97, %s100
      %p109 = scmp.eq.s32.totalorder %s24, 1
      %p110 = por %p108, %p109
      %p111 = scmp.ne.s32.totalorder %s100, %s101
      %p112 = scmp.eq.s32.totalorder %s24, 0
      %p113 = por %p111, %p112
      %p114 = scmp.ne.s32.totalorder %s100, %s101
      %p115 = scmp.eq.s32.totalorder %s25, 1
      %p116 = por %p114, %p115
      %p118 = scmp.ne.s32.totalorder %s101, %s117
      %p119 = scmp.eq.s32.totalorder %s25, 0
      %p120 = por %p118, %p119
      %s121 = ssub.s32 %s19, %s26
      %p122 = scmp.eq.s32.totalorder %s121, 0
      %s124 = sadd.s32 %s123, 1
      %s125 = scalar_select %p122, %s123, %s124
      %p128 = pneg %p122
      %p129 = scmp.eq.s32.totalorder %s19, 1
      %p130 = por %p128, %p129
      %p131 = scmp.ne.s32.totalorder %s123, %s126
      %p132 = scmp.eq.s32.totalorder %s19, 0
      %p133 = por %p131, %p132
      %p134 = scmp.ne.s32.totalorder %s123, %s126
      %p135 = scmp.eq.s32.totalorder %s24, 1
      %p136 = por %p134, %p135
      %p137 = scmp.ne.s32.totalorder %s126, %s127
      %p138 = scmp.eq.s32.totalorder %s24, 0
      %p139 = por %p137, %p138
      %p140 = scmp.ne.s32.totalorder %s126, %s127
      %p141 = scmp.eq.s32.totalorder %s25, 1
      %p142 = por %p140, %p141
      %p144 = scmp.ne.s32.totalorder %s127, %s143
      %p145 = scmp.eq.s32.totalorder %s25, 0
      %p146 = por %p144, %p145
      %p147 = scmp.le.s32.totalorder 1, %s19
      %p148 = scmp.lt.s32.totalorder %s19, 3
      %p149 = pnand %p147, %p148
      %p150 = pneg %p149
      // Predicated region
      $region9: #{tpu_custom_call.1} parent=5 // pred_check
        _
      $region10: #{tpu_custom_call.1} parent=5 // pred_check_branch
        %152 = sbr.rel (%p149) target = $region12
      $region11: #{tpu_custom_call.1} parent=5 // pred_region
        %s153 = ssub.s32 %s19, 1
        // Predicated region
        $region13: #{tpu_custom_call.1} parent=11 // pred_check
          %p154 = pneg %p66
        $region14: #{tpu_custom_call.1} parent=11 // pred_check_branch
          %156 = sbr.rel (%p154) target = $region16
        $region15: #{tpu_custom_call.1} parent=11 // pred_region
          _
        $region16: #{tpu_custom_call.1} parent=11 // pred_fallthru
          _
        // Predicated region
        $region17: #{tpu_custom_call.1} parent=11 // pred_check
          %p157 = pneg %p87
        $region18: #{tpu_custom_call.1} parent=11 // pred_check_branch
          %159 = sbr.rel (%p157) target = $region20
        $region19: #{tpu_custom_call.1} parent=11 // pred_region
          _
        $region20: #{tpu_custom_call.1} parent=11 // pred_fallthru
          _
      $region12: #{tpu_custom_call.1} parent=5 // pred_fallthru
        _
      %p160 = scmp.lt.s32.totalorder %s19, 2
      // Predicated region
      $region21: #{tpu_custom_call.1} parent=5 // pred_check
        %p161 = pneg %p160
      $region22: #{tpu_custom_call.1} parent=5 // pred_check_branch
        %163 = sbr.rel (%p161) target = $region24
      $region23: #{tpu_custom_call.1} parent=5 // pred_region
        // Predicated region
        $region25: #{tpu_custom_call.1} parent=23 // pred_check
          %p164 = pneg %p39
        $region26: #{tpu_custom_call.1} parent=23 // pred_check_branch
          %166 = sbr.rel (%p164) target = $region28
        $region27: #{tpu_custom_call.1} parent=23 // pred_region
          %s167 = sand.u32 %s29, 1
          %s168 = scalar_lea.sflag [#allocation3], %s167
          %s169 = sand.u32 %s29, 1
          %s170 = smul.addr %s169, 32
          %s171 = scalar_lea.vmem [#allocation2], %s170
          %173 = vsyncadd %s168, 0
          %s174 = smul.addr %s19, 8
          %s175 = scalar_lea.hbm %s0, %s174
          %s176 = sshll.u32 %s175, 4
          %s177 = int_to_ptr.hbm [resolvable:$true] %s176
          %s178 = sshll.u32 %s171, 4
          %s179 = int_to_ptr.vmem [resolvable:$true] %s178
          %184 = dma.hbm_to_vmem [thread:$0]  %s177, 512, %s179, %s168, 256, 128, 8
        $region28: #{tpu_custom_call.1} parent=23 // pred_fallthru
          _
        // Predicated region
        $region29: #{tpu_custom_call.1} parent=23 // pred_check
          %p185 = pneg %p107
        $region30: #{tpu_custom_call.1} parent=23 // pred_check_branch
          %187 = sbr.rel (%p185) target = $region32
        $region31: #{tpu_custom_call.1} parent=23 // pred_region
          %s188 = sand.u32 %s97, 1
          %s189 = scalar_lea.sflag [#allocation6], %s188
          %s190 = sand.u32 %s97, 1
          %s191 = smul.addr %s190, 12
          %s192 = scalar_lea.vmem [#allocation5], %s191
          %194 = vsyncadd %s189, 0
          %s195 = smul.addr %s19, 4
          %s196 = scalar_lea.hbm %s3, %s195
          %s197 = sshll.u32 %s196, 4
          %s198 = int_to_ptr.hbm [resolvable:$true] %s197
          %s199 = sshll.u32 %s192, 4
          %s200 = int_to_ptr.vmem [resolvable:$true] %s199
          %205 = dma.hbm_to_vmem [thread:$0]  %s198, 192, %s200, %s189, 128, 64, 4
        $region32: #{tpu_custom_call.1} parent=23 // pred_fallthru
          _
      $region24: #{tpu_custom_call.1} parent=5 // pred_fallthru
        _
      %p206 = scmp.le.s32.totalorder 1, %s19
      %p207 = scmp.lt.s32.totalorder %s19, 3
      %p208 = pnand %p206, %p207
      %p209 = pneg %p208
      // Predicated region
      $region33: #{tpu_custom_call.1} parent=5 // pred_check
        _
      $region34: #{tpu_custom_call.1} parent=5 // pred_check_branch
        %211 = sbr.rel (%p208) target = $region36
      $region35: #{tpu_custom_call.1} parent=5 // pred_region
        %s212 = ssub.s32 %s19, 1
        %s213 = sand.u32 %s32, 1
        %s214 = scalar_lea.sflag [#allocation3], %s213
        %s215 = sand.u32 %s32, 1
        %s216 = smul.addr %s215, 32
        %s217 = scalar_lea.vmem [#allocation2], %s216
        // Predicated region
        $region37: #{tpu_custom_call.1} parent=35 // pred_check
          %p218 = pneg %p45
        $region38: #{tpu_custom_call.1} parent=35 // pred_check_branch
          %220 = sbr.rel (%p218) target = $region40
        $region39: #{tpu_custom_call.1} parent=35 // pred_region
          %222 = dma.done %s214, 512
        $region40: #{tpu_custom_call.1} parent=35 // pred_fallthru
          _
        %s223 = sand.u32 %s100, 1
        %s224 = scalar_lea.sflag [#allocation6], %s223
        %s225 = sand.u32 %s100, 1
        %s226 = smul.addr %s225, 12
        %s227 = scalar_lea.vmem [#allocation5], %s226
        // Predicated region
        $region41: #{tpu_custom_call.1} parent=35 // pred_check
          %p228 = pneg %p113
        $region42: #{tpu_custom_call.1} parent=35 // pred_check_branch
          %230 = sbr.rel (%p228) target = $region44
        $region43: #{tpu_custom_call.1} parent=35 // pred_region
          %232 = dma.done %s224, 192
        $region44: #{tpu_custom_call.1} parent=35 // pred_fallthru
          _
        %s233 = sand.u32 %s32, 1
        %s234 = scalar_lea.sflag [#allocation3], %s233
        %s235 = sand.u32 %s32, 1
        %s236 = smul.addr %s235, 32
        %s237 = scalar_lea.vmem [#allocation2], %s236
        %p238 = pneg %p45
        %p239 = pneg %p42
        %p240 = pneg %p66
        %p241 = pneg %p63
        %p242 = pneg %p87
        %p243 = pneg %p84
        %s244 = sand.u32 %s100, 1
        %s245 = scalar_lea.sflag [#allocation6], %s244
        %s246 = sand.u32 %s100, 1
        %s247 = smul.addr %s246, 12
        %s248 = scalar_lea.vmem [#allocation5], %s247
        %p249 = pneg %p113
        %p250 = pneg %p110
        %p251 = pneg %p139
        %p252 = pneg %p136
        %s253 = sand.u32 %s126, 1
        %s254 = scalar_lea.sflag [#allocation4], %s253
        %s255 = sand.u32 %s126, 1
        %s256 = smul.addr %s255, 36
        %s257 = scalar_lea.vmem [#allocation7], %s256
        %v258 = vld [vmem:[%s1] sm:$0xff]
        %v259 = vld [vmem:[%s217] sm:$0xff]
        %v260 = vld [vmem:[%s217 + $0x8] sm:$0xff]
        %v261 = vld [vmem:[%s217 + $0x10] sm:$0xff]
        %v262 = vld [vmem:[%s217 + $0x18] sm:$0xff]
        %v263 = vld [vmem:[%s2] sm:$0xff]
        %265 = vset.pattern.permute.xlu0 0
        %266 = vperm.xlu0 %265, %v263
        %v267 = vpop.permute.xlu0 %266
        %vm269 = vcmask 261120
        %v271 = vsel %vm269, %v258, 0
        %273 = vmatpush.msra.mxu0 0.0
        %274 = vmatpush.msra.mxu0 0.0
        %275 = vmatpush.msra.mxu0 0.0
        %276 = vmatpush.msra.mxu0 0.0
        %277 = vmatpush.msra.mxu0 0.0
        %278 = vmatpush.msra.mxu0 0.0
        %279 = vmatpush.msra.mxu0 0.0
        %280 = vmatpush.msra.mxu0 0.0
        %281 = vmatpush.msra.mxu0 0.0
        %282 = vmatpush.msra.mxu0 0.0
        %283 = vmatpush.msra.mxu0 0.0
        %284 = vmatpush.msra.mxu0 0.0
        %285 = vmatpush.msra.mxu0 %v262
        %286 = vmatpush.msra.mxu0 %v261
        %287 = vmatpush.msra.mxu0 %v260
        %288 = vmatpush.msra.mxu0 %v259
        %289 = vmatmul.f32.gmra.mxu0 %v271
        %v290 = vpop.f32.mrf.mxu0
        %v291 = vadd.f32 %v267, %v290
        %292 = vdwg.mxu0
        %v293 = vmax.f32 %v291, 0.0
        %vm294 = vcmp.ne.f32.partialorder %v291, %v291
        %v295 = vadd.f32 %v291, 0.0
        %v296 = vand.u32 2147483647, %v291
        %v297 = vsub.f32 0.0, %v296
        %v298 = vmul.f32 %v297, 1.442695
        %v299 = vpow.pop %v298
        %v300 = vadd.f32 %v299, 1.0
        %v301 = vlog2.pop %v300
        %v302 = vmul.f32 %v301, 0.6931472
        %v303 = vmul.f32 -0.5, %v299
        %v304 = vadd.f32 %v303, 1.0
        %v305 = vmul.f32 %v304, %v299
        %v306 = vand.u32 2147483647, %v299
        %vm307 = vcmp.lt.f32.partialorder %v306, 0.0004427343
        %v308 = vsel %vm307, %v305, %v302
        %v309 = vadd.f32 %v293, %v308
        %v310 = vsel %vm294, %v295, %v309
        %v311 = vld [vmem:[%s227] sm:$0xf]
        %v312 = vperm.slane %v310, 3
        %v313 = vmul.f32 %v312, %v311
        %s314 = scalar_lea.vmem %s227, 4 [#allocation5]
        %v315 = vld [vmem:[%s314] sm:$0xf]
        %v316 = vperm.slane %v310, 4
        %v317 = vmul.f32 %v316, %v315
        %s318 = scalar_lea.vmem %s227, 8 [#allocation5]
        %v319 = vld [vmem:[%s318] sm:$0xf]
        %v320 = vperm.slane %v310, 5
        %v321 = vmul.f32 %v320, %v319
        %v322 = vmul.f32 %v291, %v291
        %v324 = vrot.slane %v322, 1
        %v326 = vadd.f32 %v322, %v324
        %v327 = vrot.slane %v322, 2
        %v329 = vadd.f32 %v326, %v327
        %v330 = vrsqrt.pop %v329
        %v331 = vmul.f32 %v330, %v329
        %v332 = vmul.f32 %v331, %v330
        %v333 = vmul.f32 0.5, %v332
        %v334 = vsub.f32 1.5, %v333
        %v335 = vmul.f32 %v330, %v334
        %v336 = vmul.f32 %v329, %v335
        %vm337 = vcmp.eq.f32.partialorder %v329, inf
        %v338 = vsel %vm337, %v329, %v336
        %vm339 = vcmp.eq.f32.partialorder %v329, 0.0
        %v340 = vand.u32 %v329, 2147483648
        %v341 = vsel %vm339, %v340, %v338
        %v342 = vrcp.pop %v341
        %v343 = vmul.f32 %v341, %v342
        %v344 = vsub.f32 1.0, %v343
        %v345 = vmul.f32 %v342, %v344
        %v346 = vadd.f32 %v342, %v345
        %vm347 = vweird.f32 %v341
        %vm348 = vweird.f32 %v342
        %vm349 = vmor %vm347, %vm348
        %v350 = vsel %vm349, %v342, %v346
        %v351 = vand.u32 2147483647, %v341
        %vm352 = vcmp.eq.f32.partialorder %v351, 8.507059e+37
        %v353 = vand.u32 %v341, 2147483648
        %v354 = vor.u32 1.1754944e-38, %v353
        %v355 = vsel %vm352, %v354, %v350
        %v356 = vmul.f32 1.0, %v355
        %v357 = vmul.f32 %v291, %v356
        %v359 = vrot.slane %v356, 7
        %v361 = vmul.f32 %v291, %v359
        %v362 = vrot.slane %v356, 6
        %v364 = vmul.f32 %v291, %v362
        %v365 = vand.u32 2147483647, %v341
        %vm366 = vcmp.le.f32.partialorder %v365, 0.7853982
        %vm367 = vcmp.lt.s32.totalorder %v341, 0
        %v368 = vand.u32 %v341, 2139095040
        %v369 = vshrl.u32 %v368, 23
        %v370 = vsub.s32 %v369, 127
        %v371 = vand.u32 2147483647, %v341
        %v372 = vand.u32 %v371, 8388607
        %v373 = vor.u32 %v372, 8388608
        %v374 = vsub.s32 0, %v373
        %v375 = vadd.s32 %v370, 1
        %vm376 = vcmp.gt.s32.totalorder %v375, 0
        %v377 = vsel %vm376, %v375, 0
        %v378 = vshrl.u32 %v377, 5
        %v379 = vand.u32 %v377, 31
        %v380 = vsub.s32 32, %v379
        %v381 = vshrl.u32 683565275, %v380
        %v382 = vshll.u32 683565275, %v379
        %v383 = vshrl.u32 2475754826, %v380
        %v384 = vor.u32 %v382, %v383
        %v385 = vshll.u32 2475754826, %v379
        %v386 = vshrl.u32 2131351028, %v380
        %v387 = vor.u32 %v385, %v386
        %v388 = vshll.u32 2131351028, %v379
        %v389 = vshrl.u32 2102212464, %v380
        %v390 = vor.u32 %v388, %v389
        %v391 = vshll.u32 2102212464, %v379
        %v392 = vshrl.u32 920167782, %v380
        %v393 = vor.u32 %v391, %v392
        %v394 = vshll.u32 920167782, %v379
        %v395 = vshrl.u32 1326507024, %v380
        %v396 = vor.u32 %v394, %v395
        %vm397 = vcmp.lt.s32.totalorder %v378, 1
        %vm398 = vcmp.lt.s32.totalorder %v378, 2
        %vm399 = vcmp.lt.s32.totalorder %v378, 3
        %vm400 = vcmp.lt.s32.totalorder %v378, 4
        %v401 = vsel %vm397, %v381, %v384
        %v402 = vsel %vm400, %v390, 2102212464
        %v403 = vsel %vm399, %v387, %v402
        %v404 = vsel %vm398, %v401, %v403
        %v405 = vsel %vm397, %v384, %v387
        %v406 = vsel %vm400, %v393, 920167782
        %v407 = vsel %vm399, %v390, %v406
        %v408 = vsel %vm398, %v405, %v407
        %v409 = vsel %vm397, %v387, %v390
        %v410 = vsel %vm400, %v396, 1326507024
        %v411 = vsel %vm399, %v393, %v410
        %v412 = vsel %vm398, %v409, %v411
        %v413 = vshll.u32 %v373, 8
        %v414 = vand.u32 %v413, 65535
        %v415 = vshrl.u32 %v413, 16
        %v416 = vand.u32 %v412, 65535
        %v417 = vshrl.u32 %v412, 16
        %v418 = vmul.u32 %v414, %v416
        %v419 = vmul.u32 %v414, %v417
        %v420 = vmul.u32 %v415, %v416
        %v421 = vmul.u32 %v415, %v417
        %v422 = vshll.u32 %v419, 16
        %v423 = vshrl.u32 %v419, 16
        %v424 = vshll.u32 %v420, 16
        %v425 = vshrl.u32 %v420, 16
        %vm426 = vc.u32 %v418, %v422
        %v427 = vsel %vm426, 1, 0
        %v428 = vadd.s32 %v418, %v422
        %v429 = vadd.s32 %v421, %v427
        %vm430 = vc.u32 %v428, %v424
        %v431 = vsel %vm430, 1, 0
        %v432 = vadd.s32 %v428, %v424
        %v433 = vadd.s32 %v429, %v431
        %v434 = vadd.s32 %v433, %v423
        %v435 = vadd.s32 %v434, %v425
        %v436 = vand.u32 %v413, 65535
        %v437 = vshrl.u32 %v413, 16
        %v438 = vand.u32 %v408, 65535
        %v439 = vshrl.u32 %v408, 16
        %v440 = vmul.u32 %v436, %v438
        %v441 = vmul.u32 %v436, %v439
        %v442 = vmul.u32 %v437, %v438
        %v443 = vmul.u32 %v437, %v439
        %v444 = vshll.u32 %v441, 16
        %v445 = vshrl.u32 %v441, 16
        %v446 = vshll.u32 %v442, 16
        %v447 = vshrl.u32 %v442, 16
        %vm448 = vc.u32 %v440, %v444
        %v449 = vsel %vm448, 1, 0
        %v450 = vadd.s32 %v440, %v444
        %v451 = vadd.s32 %v443, %v449
        %vm452 = vc.u32 %v450, %v446
        %v453 = vsel %vm452, 1, 0
        %v454 = vadd.s32 %v450, %v446
        %v455 = vadd.s32 %v451, %v453
        %v456 = vadd.s32 %v455, %v445
        %v457 = vadd.s32 %v456, %v447
        %v458 = vmul.u32 %v413, %v404
        %v459 = vadd.s32 %v435, %v454
        %vm460 = vc.u32 %v435, %v454
        %v461 = vadd.s32 %v457, 1
        %v462 = vsel %vm460, %v461, %v457
        %v463 = vadd.s32 %v458, %v462
        %v464 = vadd.s32 %v463, 536870912
        %v465 = vshrl.u32 %v464, 30
        %v466 = vshll.u32 %v465, 30
        %v467 = vsub.s32 %v463, %v466
        %vm468 = vcmp.lt.s32.totalorder %v467, 0
        %v469 = vsub.s32 0, %v467
        %v470 = vsel %vm468, %v469, %v467
        %v471 = vclz %v470
        %v472 = vsub.s32 %v471, 2
        %vm473 = vcmp.gt.s32.totalorder 0, %v472
        %v474 = vsel %vm473, 0, %v472
        %v475 = vsub.s32 32, %v474
        %v476 = vshll.u32 %v467, %v474
        %v477 = vshrl.u32 %v459, %v475
        %v478 = vor.u32 %v476, %v477
        %v479 = vsub.s32 4294967266, %v474
        %v480 = vadd.s32 %v479, 127
        %v481 = vshll.u32 %v480, 23
        %v482 = vor.u32 4788187, %v481
        %v483 = vand.u32 2147483647, %v482
        %v485 = vcvt.s32.f32 %v478
        %v486 = vmul.f32 %v485, %v483
        %v487 = vxor.u32 %v486, 2147483648
        %v488 = vsel %vm367, %v487, %v486
        %v489 = vsub.s32 4, %v465
        %v490 = vsel %vm367, %v489, %v465
        %v491 = vsel %vm366, %v341, %v488
        %v492 = vsel %vm366, 0, %v490
        %v493 = vmul.f32 %v491, %v491
        %v494 = vmul.f32 %v493, -0.001358992
        %v495 = vadd.f32 %v494, 0.041655596
        %v496 = vmul.f32 %v493, %v495
        %v497 = vadd.f32 %v496, -0.4999988
        %v498 = vmul.f32 %v493, %v497
        %v499 = vadd.f32 1.0, %v498
        %v500 = vmul.f32 %v491, %v491
        %v501 = vmul.f32 %v500, -0.00019511016
        %v502 = vadd.f32 %v501, 0.008332121
        %v503 = vmul.f32 %v500, %v502
        %v504 = vadd.f32 %v503, -0.16666654
        %v505 = vmul.f32 %v500, %v504
        %v506 = vadd.f32 %v505, 1.0
        %v507 = vmul.f32 %v506, %v491
        %vm508 = vweird.f32 %v341
        %v509 = vadd.s32 %v492, 3
        %v510 = vand.u32 %v509, 3
        %vm511 = vcmp.lt.s32.totalorder %v510, 2
        %vm512 = vcmp.eq.s32.totalorder %v510, 0
        %v513 = vxor.u32 %v507, 2147483648
        %v514 = vsel %vm512, %v499, %v513
        %vm515 = vcmp.eq.s32.totalorder %v510, 2
        %v516 = vxor.u32 %v499, 2147483648
        %v517 = vsel %vm515, %v516, %v507
        %v518 = vsel %vm511, %v514, %v517
        %v519 = vsel %vm508, nan, %v518
        %v520 = vand.u32 2147483647, %v341
        %vm521 = vcmp.le.f32.partialorder %v520, 0.7853982
        %vm522 = vcmp.lt.s32.totalorder %v341, 0
        %v523 = vand.u32 %v341, 2139095040
        %v524 = vshrl.u32 %v523, 23
        %v525 = vsub.s32 %v524, 127
        %v526 = vand.u32 2147483647, %v341
        %v527 = vand.u32 %v526, 8388607
        %v528 = vor.u32 %v527, 8388608
        %v529 = vsub.s32 0, %v528
        %v530 = vadd.s32 %v525, 1
        %vm531 = vcmp.gt.s32.totalorder %v530, 0
        %v532 = vsel %vm531, %v530, 0
        %v533 = vshrl.u32 %v532, 5
        %v534 = vand.u32 %v532, 31
        %v535 = vsub.s32 32, %v534
        %v536 = vshrl.u32 683565275, %v535
        %v537 = vshll.u32 683565275, %v534
        %v538 = vshrl.u32 2475754826, %v535
        %v539 = vor.u32 %v537, %v538
        %v540 = vshll.u32 2475754826, %v534
        %v541 = vshrl.u32 2131351028, %v535
        %v542 = vor.u32 %v540, %v541
        %v543 = vshll.u32 2131351028, %v534
        %v544 = vshrl.u32 2102212464, %v535
        %v545 = vor.u32 %v543, %v544
        %v546 = vshll.u32 2102212464, %v534
        %v547 = vshrl.u32 920167782, %v535
        %v548 = vor.u32 %v546, %v547
        %v549 = vshll.u32 920167782, %v534
        %v550 = vshrl.u32 1326507024, %v535
        %v551 = vor.u32 %v549, %v550
        %vm552 = vcmp.lt.s32.totalorder %v533, 1
        %vm553 = vcmp.lt.s32.totalorder %v533, 2
        %vm554 = vcmp.lt.s32.totalorder %v533, 3
        %vm555 = vcmp.lt.s32.totalorder %v533, 4
        %v556 = vsel %vm552, %v536, %v539
        %v557 = vsel %vm555, %v545, 2102212464
        %v558 = vsel %vm554, %v542, %v557
        %v559 = vsel %vm553, %v556, %v558
        %v560 = vsel %vm552, %v539, %v542
        %v561 = vsel %vm555, %v548, 920167782
        %v562 = vsel %vm554, %v545, %v561
        %v563 = vsel %vm553, %v560, %v562
        %v564 = vsel %vm552, %v542, %v545
        %v565 = vsel %vm555, %v551, 1326507024
        %v566 = vsel %vm554, %v548, %v565
        %v567 = vsel %vm553, %v564, %v566
        %v568 = vshll.u32 %v528, 8
        %v569 = vand.u32 %v568, 65535
        %v570 = vshrl.u32 %v568, 16
        %v571 = vand.u32 %v567, 65535
        %v572 = vshrl.u32 %v567, 16
        %v573 = vmul.u32 %v569, %v571
        %v574 = vmul.u32 %v569, %v572
        %v575 = vmul.u32 %v570, %v571
        %v576 = vmul.u32 %v570, %v572
        %v577 = vshll.u32 %v574, 16
        %v578 = vshrl.u32 %v574, 16
        %v579 = vshll.u32 %v575, 16
        %v580 = vshrl.u32 %v575, 16
        %vm581 = vc.u32 %v573, %v577
        %v582 = vsel %vm581, 1, 0
        %v583 = vadd.s32 %v573, %v577
        %v584 = vadd.s32 %v576, %v582
        %vm585 = vc.u32 %v583, %v579
        %v586 = vsel %vm585, 1, 0
        %v587 = vadd.s32 %v583, %v579
        %v588 = vadd.s32 %v584, %v586
        %v589 = vadd.s32 %v588, %v578
        %v590 = vadd.s32 %v589, %v580
        %v591 = vand.u32 %v568, 65535
        %v592 = vshrl.u32 %v568, 16
        %v593 = vand.u32 %v563, 65535
        %v594 = vshrl.u32 %v563, 16
        %v595 = vmul.u32 %v591, %v593
        %v596 = vmul.u32 %v591, %v594
        %v597 = vmul.u32 %v592, %v593
        %v598 = vmul.u32 %v592, %v594
        %v599 = vshll.u32 %v596, 16
        %v600 = vshrl.u32 %v596, 16
        %v601 = vshll.u32 %v597, 16
        %v602 = vshrl.u32 %v597, 16
        %vm603 = vc.u32 %v595, %v599
        %v604 = vsel %vm603, 1, 0
        %v605 = vadd.s32 %v595, %v599
        %v606 = vadd.s32 %v598, %v604
        %vm607 = vc.u32 %v605, %v601
        %v608 = vsel %vm607, 1, 0
        %v609 = vadd.s32 %v605, %v601
        %v610 = vadd.s32 %v606, %v608
        %v611 = vadd.s32 %v610, %v600
        %v612 = vadd.s32 %v611, %v602
        %v613 = vmul.u32 %v568, %v559
        %v614 = vadd.s32 %v590, %v609
        %vm615 = vc.u32 %v590, %v609
        %v616 = vadd.s32 %v612, 1
        %v617 = vsel %vm615, %v616, %v612
        %v618 = vadd.s32 %v613, %v617
        %v619 = vadd.s32 %v618, 536870912
        %v620 = vshrl.u32 %v619, 30
        %v621 = vshll.u32 %v620, 30
        %v622 = vsub.s32 %v618, %v621
        %vm623 = vcmp.lt.s32.totalorder %v622, 0
        %v624 = vsub.s32 0, %v622
        %v625 = vsel %vm623, %v624, %v622
        %v626 = vclz %v625
        %v627 = vsub.s32 %v626, 2
        %vm628 = vcmp.gt.s32.totalorder 0, %v627
        %v629 = vsel %vm628, 0, %v627
        %v630 = vsub.s32 32, %v629
        %v631 = vshll.u32 %v622, %v629
        %v632 = vshrl.u32 %v614, %v630
        %v633 = vor.u32 %v631, %v632
        %v634 = vsub.s32 4294967266, %v629
        %v635 = vadd.s32 %v634, 127
        %v636 = vshll.u32 %v635, 23
        %v637 = vor.u32 4788187, %v636
        %v638 = vand.u32 2147483647, %v637
        %v640 = vcvt.s32.f32 %v633
        %v641 = vmul.f32 %v640, %v638
        %v642 = vxor.u32 %v641, 2147483648
        %v643 = vsel %vm522, %v642, %v641
        %v644 = vsub.s32 4, %v620
        %v645 = vsel %vm522, %v644, %v620
        %v646 = vsel %vm521, %v341, %v643
        %v647 = vsel %vm521, 0, %v645
        %v648 = vmul.f32 %v646, %v646
        %v649 = vmul.f32 %v648, -0.001358992
        %v650 = vadd.f32 %v649, 0.041655596
        %v651 = vmul.f32 %v648, %v650
        %v652 = vadd.f32 %v651, -0.4999988
        %v653 = vmul.f32 %v648, %v652
        %v654 = vadd.f32 1.0, %v653
        %v655 = vmul.f32 %v646, %v646
        %v656 = vmul.f32 %v655, -0.00019511016
        %v657 = vadd.f32 %v656, 0.008332121
        %v658 = vmul.f32 %v655, %v657
        %v659 = vadd.f32 %v658, -0.16666654
        %v660 = vmul.f32 %v655, %v659
        %v661 = vadd.f32 %v660, 1.0
        %v662 = vmul.f32 %v661, %v646
        %vm663 = vweird.f32 %v341
        %v664 = vand.u32 %v647, 3
        %vm665 = vcmp.lt.s32.totalorder %v664, 2
        %vm666 = vcmp.eq.s32.totalorder %v664, 0
        %v667 = vxor.u32 %v662, 2147483648
        %v668 = vsel %vm666, %v654, %v667
        %vm669 = vcmp.eq.s32.totalorder %v664, 2
        %v670 = vxor.u32 %v654, 2147483648
        %v671 = vsel %vm669, %v670, %v662
        %v672 = vsel %vm665, %v668, %v671
        %v673 = vsel %vm663, nan, %v672
        %v674 = vsub.f32 1.0, %v673
        %v675 = vmul.f32 %v674, %v357
        %v676 = vmul.f32 %v675, %v357
        %v677 = vadd.f32 %v673, %v676
        %v679 = vrot.slane %v361, 1
        %v681 = vmul.f32 %v675, %v679
        %v683 = vrot.slane %v364, 2
        %v685 = vmul.f32 %v519, %v683
        %v686 = vsub.f32 %v681, %v685
        %v687 = vmul.f32 %v675, %v683
        %v688 = vmul.f32 %v519, %v679
        %v689 = vadd.f32 %v687, %v688
        %v690 = vadd.f32 %v681, %v685
        %v691 = vmul.f32 %v674, %v679
        %v692 = vmul.f32 %v691, %v679
        %v693 = vadd.f32 %v673, %v692
        %v694 = vmul.f32 %v691, %v683
        %v695 = vmul.f32 %v519, %v357
        %v696 = vsub.f32 %v694, %v695
        %v697 = vsub.f32 %v687, %v688
        %v698 = vadd.f32 %v694, %v695
        %v699 = vmul.f32 %v674, %v683
        %v700 = vmul.f32 %v699, %v683
        %v701 = vadd.f32 %v673, %v700
        %v702 = vmul.f32 %v313, %v313
        %v703 = vmul.f32 %v317, %v317
        %v704 = vadd.f32 %v702, %v703
        %v705 = vmul.f32 %v321, %v321
        %v706 = vadd.f32 %v704, %v705
        %v707 = vrsqrt.pop %v706
        %v708 = vmul.f32 %v707, %v706
        %v709 = vmul.f32 %v708, %v707
        %v710 = vmul.f32 0.5, %v709
        %v711 = vsub.f32 1.5, %v710
        %v712 = vmul.f32 %v707, %v711
        %v713 = vmul.f32 %v706, %v712
        %vm714 = vcmp.eq.f32.partialorder %v706, inf
        %v715 = vsel %vm714, %v706, %v713
        %vm716 = vcmp.eq.f32.partialorder %v706, 0.0
        %v717 = vand.u32 %v706, 2147483648
        %v718 = vsel %vm716, %v717, %v715
        %v719 = vrcp.pop %v718
        %v720 = vmul.f32 %v718, %v719
        %v721 = vsub.f32 1.0, %v720
        %v722 = vmul.f32 %v719, %v721
        %v723 = vadd.f32 %v719, %v722
        %vm724 = vweird.f32 %v718
        %vm725 = vweird.f32 %v719
        %vm726 = vmor %vm724, %vm725
        %v727 = vsel %vm726, %v719, %v723
        %v728 = vand.u32 2147483647, %v718
        %vm729 = vcmp.eq.f32.partialorder %v728, 8.507059e+37
        %v730 = vand.u32 %v718, 2147483648
        %v731 = vor.u32 1.1754944e-38, %v730
        %v732 = vsel %vm729, %v731, %v727
        %v733 = vmul.f32 1.0, %v732
        %v734 = vmul.f32 %v313, %v733
        %v735 = vmul.f32 %v317, %v733
        %v736 = vmul.f32 %v321, %v733
        %v737 = vand.u32 2147483647, %v718
        %vm738 = vcmp.le.f32.partialorder %v737, 0.7853982
        %vm739 = vcmp.lt.s32.totalorder %v718, 0
        %v740 = vand.u32 %v718, 2139095040
        %v741 = vshrl.u32 %v740, 23
        %v742 = vsub.s32 %v741, 127
        %v743 = vand.u32 2147483647, %v718
        %v744 = vand.u32 %v743, 8388607
        %v745 = vor.u32 %v744, 8388608
        %v746 = vsub.s32 0, %v745
        %v747 = vadd.s32 %v742, 1
        %vm748 = vcmp.gt.s32.totalorder %v747, 0
        %v749 = vsel %vm748, %v747, 0
        %v750 = vshrl.u32 %v749, 5
        %v751 = vand.u32 %v749, 31
        %v752 = vsub.s32 32, %v751
        %v753 = vshrl.u32 683565275, %v752
        %v754 = vshll.u32 683565275, %v751
        %v755 = vshrl.u32 2475754826, %v752
        %v756 = vor.u32 %v754, %v755
        %v757 = vshll.u32 2475754826, %v751
        %v758 = vshrl.u32 2131351028, %v752
        %v759 = vor.u32 %v757, %v758
        %v760 = vshll.u32 2131351028, %v751
        %v761 = vshrl.u32 2102212464, %v752
        %v762 = vor.u32 %v760, %v761
        %v763 = vshll.u32 2102212464, %v751
        %v764 = vshrl.u32 920167782, %v752
        %v765 = vor.u32 %v763, %v764
        %v766 = vshll.u32 920167782, %v751
        %v767 = vshrl.u32 1326507024, %v752
        %v768 = vor.u32 %v766, %v767
        %vm769 = vcmp.lt.s32.totalorder %v750, 1
        %vm770 = vcmp.lt.s32.totalorder %v750, 2
        %vm771 = vcmp.lt.s32.totalorder %v750, 3
        %vm772 = vcmp.lt.s32.totalorder %v750, 4
        %v773 = vsel %vm769, %v753, %v756
        %v774 = vsel %vm772, %v762, 2102212464
        %v775 = vsel %vm771, %v759, %v774
        %v776 = vsel %vm770, %v773, %v775
        %v777 = vsel %vm769, %v756, %v759
        %v778 = vsel %vm772, %v765, 920167782
        %v779 = vsel %vm771, %v762, %v778
        %v780 = vsel %vm770, %v777, %v779
        %v781 = vsel %vm769, %v759, %v762
        %v782 = vsel %vm772, %v768, 1326507024
        %v783 = vsel %vm771, %v765, %v782
        %v784 = vsel %vm770, %v781, %v783
        %v785 = vshll.u32 %v745, 8
        %v786 = vand.u32 %v785, 65535
        %v787 = vshrl.u32 %v785, 16
        %v788 = vand.u32 %v784, 65535
        %v789 = vshrl.u32 %v784, 16
        %v790 = vmul.u32 %v786, %v788
        %v791 = vmul.u32 %v786, %v789
        %v792 = vmul.u32 %v787, %v788
        %v793 = vmul.u32 %v787, %v789
        %v794 = vshll.u32 %v791, 16
        %v795 = vshrl.u32 %v791, 16
        %v796 = vshll.u32 %v792, 16
        %v797 = vshrl.u32 %v792, 16
        %vm798 = vc.u32 %v790, %v794
        %v799 = vsel %vm798, 1, 0
        %v800 = vadd.s32 %v790, %v794
        %v801 = vadd.s32 %v793, %v799
        %vm802 = vc.u32 %v800, %v796
        %v803 = vsel %vm802, 1, 0
        %v804 = vadd.s32 %v800, %v796
        %v805 = vadd.s32 %v801, %v803
        %v806 = vadd.s32 %v805, %v795
        %v807 = vadd.s32 %v806, %v797
        %v808 = vand.u32 %v785, 65535
        %v809 = vshrl.u32 %v785, 16
        %v810 = vand.u32 %v780, 65535
        %v811 = vshrl.u32 %v780, 16
        %v812 = vmul.u32 %v808, %v810
        %v813 = vmul.u32 %v808, %v811
        %v814 = vmul.u32 %v809, %v810
        %v815 = vmul.u32 %v809, %v811
        %v816 = vshll.u32 %v813, 16
        %v817 = vshrl.u32 %v813, 16
        %v818 = vshll.u32 %v814, 16
        %v819 = vshrl.u32 %v814, 16
        %vm820 = vc.u32 %v812, %v816
        %v821 = vsel %vm820, 1, 0
        %v822 = vadd.s32 %v812, %v816
        %v823 = vadd.s32 %v815, %v821
        %vm824 = vc.u32 %v822, %v818
        %v825 = vsel %vm824, 1, 0
        %v826 = vadd.s32 %v822, %v818
        %v827 = vadd.s32 %v823, %v825
        %v828 = vadd.s32 %v827, %v817
        %v829 = vadd.s32 %v828, %v819
        %v830 = vmul.u32 %v785, %v776
        %v831 = vadd.s32 %v807, %v826
        %vm832 = vc.u32 %v807, %v826
        %v833 = vadd.s32 %v829, 1
        %v834 = vsel %vm832, %v833, %v829
        %v835 = vadd.s32 %v830, %v834
        %v836 = vadd.s32 %v835, 536870912
        %v837 = vshrl.u32 %v836, 30
        %v838 = vshll.u32 %v837, 30
        %v839 = vsub.s32 %v835, %v838
        %vm840 = vcmp.lt.s32.totalorder %v839, 0
        %v841 = vsub.s32 0, %v839
        %v842 = vsel %vm840, %v841, %v839
        %v843 = vclz %v842
        %v844 = vsub.s32 %v843, 2
        %vm845 = vcmp.gt.s32.totalorder 0, %v844
        %v846 = vsel %vm845, 0, %v844
        %v847 = vsub.s32 32, %v846
        %v848 = vshll.u32 %v839, %v846
        %v849 = vshrl.u32 %v831, %v847
        %v850 = vor.u32 %v848, %v849
        %v851 = vsub.s32 4294967266, %v846
        %v852 = vadd.s32 %v851, 127
        %v853 = vshll.u32 %v852, 23
        %v854 = vor.u32 4788187, %v853
        %v855 = vand.u32 2147483647, %v854
        %v857 = vcvt.s32.f32 %v850
        %v858 = vmul.f32 %v857, %v855
        %v859 = vxor.u32 %v858, 2147483648
        %v860 = vsel %vm739, %v859, %v858
        %v861 = vsub.s32 4, %v837
        %v862 = vsel %vm739, %v861, %v837
        %v863 = vsel %vm738, %v718, %v860
        %v864 = vsel %vm738, 0, %v862
        %v865 = vmul.f32 %v863, %v863
        %v866 = vmul.f32 %v865, -0.001358992
        %v867 = vadd.f32 %v866, 0.041655596
        %v868 = vmul.f32 %v865, %v867
        %v869 = vadd.f32 %v868, -0.4999988
        %v870 = vmul.f32 %v865, %v869
        %v871 = vadd.f32 1.0, %v870
        %v872 = vmul.f32 %v863, %v863
        %v873 = vmul.f32 %v872, -0.00019511016
        %v874 = vadd.f32 %v873, 0.008332121
        %v875 = vmul.f32 %v872, %v874
        %v876 = vadd.f32 %v875, -0.16666654
        %v877 = vmul.f32 %v872, %v876
        %v878 = vadd.f32 %v877, 1.0
        %v879 = vmul.f32 %v878, %v863
        %vm880 = vweird.f32 %v718
        %v881 = vadd.s32 %v864, 3
        %v882 = vand.u32 %v881, 3
        %vm883 = vcmp.lt.s32.totalorder %v882, 2
        %vm884 = vcmp.eq.s32.totalorder %v882, 0
        %v885 = vxor.u32 %v879, 2147483648
        %v886 = vsel %vm884, %v871, %v885
        %vm887 = vcmp.eq.s32.totalorder %v882, 2
        %v888 = vxor.u32 %v871, 2147483648
        %v889 = vsel %vm887, %v888, %v879
        %v890 = vsel %vm883, %v886, %v889
        %v891 = vsel %vm880, nan, %v890
        %v892 = vand.u32 2147483647, %v718
        %vm893 = vcmp.le.f32.partialorder %v892, 0.7853982
        %vm894 = vcmp.lt.s32.totalorder %v718, 0
        %v895 = vand.u32 %v718, 2139095040
        %v896 = vshrl.u32 %v895, 23
        %v897 = vsub.s32 %v896, 127
        %v898 = vand.u32 2147483647, %v718
        %v899 = vand.u32 %v898, 8388607
        %v900 = vor.u32 %v899, 8388608
        %v901 = vsub.s32 0, %v900
        %v902 = vadd.s32 %v897, 1
        %vm903 = vcmp.gt.s32.totalorder %v902, 0
        %v904 = vsel %vm903, %v902, 0
        %v905 = vshrl.u32 %v904, 5
        %v906 = vand.u32 %v904, 31
        %v907 = vsub.s32 32, %v906
        %v908 = vshrl.u32 683565275, %v907
        %v909 = vshll.u32 683565275, %v906
        %v910 = vshrl.u32 2475754826, %v907
        %v911 = vor.u32 %v909, %v910
        %v912 = vshll.u32 2475754826, %v906
        %v913 = vshrl.u32 2131351028, %v907
        %v914 = vor.u32 %v912, %v913
        %v915 = vshll.u32 2131351028, %v906
        %v916 = vshrl.u32 2102212464, %v907
        %v917 = vor.u32 %v915, %v916
        %v918 = vshll.u32 2102212464, %v906
        %v919 = vshrl.u32 920167782, %v907
        %v920 = vor.u32 %v918, %v919
        %v921 = vshll.u32 920167782, %v906
        %v922 = vshrl.u32 1326507024, %v907
        %v923 = vor.u32 %v921, %v922
        %vm924 = vcmp.lt.s32.totalorder %v905, 1
        %vm925 = vcmp.lt.s32.totalorder %v905, 2
        %vm926 = vcmp.lt.s32.totalorder %v905, 3
        %vm927 = vcmp.lt.s32.totalorder %v905, 4
        %v928 = vsel %vm924, %v908, %v911
        %v929 = vsel %vm927, %v917, 2102212464
        %v930 = vsel %vm926, %v914, %v929
        %v931 = vsel %vm925, %v928, %v930
        %v932 = vsel %vm924, %v911, %v914
        %v933 = vsel %vm927, %v920, 920167782
        %v934 = vsel %vm926, %v917, %v933
        %v935 = vsel %vm925, %v932, %v934
        %v936 = vsel %vm924, %v914, %v917
        %v937 = vsel %vm927, %v923, 1326507024
        %v938 = vsel %vm926, %v920, %v937
        %v939 = vsel %vm925, %v936, %v938
        %v940 = vshll.u32 %v900, 8
        %v941 = vand.u32 %v940, 65535
        %v942 = vshrl.u32 %v940, 16
        %v943 = vand.u32 %v939, 65535
        %v944 = vshrl.u32 %v939, 16
        %v945 = vmul.u32 %v941, %v943
        %v946 = vmul.u32 %v941, %v944
        %v947 = vmul.u32 %v942, %v943
        %v948 = vmul.u32 %v942, %v944
        %v949 = vshll.u32 %v946, 16
        %v950 = vshrl.u32 %v946, 16
        %v951 = vshll.u32 %v947, 16
        %v952 = vshrl.u32 %v947, 16
        %vm953 = vc.u32 %v945, %v949
        %v954 = vsel %vm953, 1, 0
        %v955 = vadd.s32 %v945, %v949
        %v956 = vadd.s32 %v948, %v954
        %vm957 = vc.u32 %v955, %v951
        %v958 = vsel %vm957, 1, 0
        %v959 = vadd.s32 %v955, %v951
        %v960 = vadd.s32 %v956, %v958
        %v961 = vadd.s32 %v960, %v950
        %v962 = vadd.s32 %v961, %v952
        %v963 = vand.u32 %v940, 65535
        %v964 = vshrl.u32 %v940, 16
        %v965 = vand.u32 %v935, 65535
        %v966 = vshrl.u32 %v935, 16
        %v967 = vmul.u32 %v963, %v965
        %v968 = vmul.u32 %v963, %v966
        %v969 = vmul.u32 %v964, %v965
        %v970 = vmul.u32 %v964, %v966
        %v971 = vshll.u32 %v968, 16
        %v972 = vshrl.u32 %v968, 16
        %v973 = vshll.u32 %v969, 16
        %v974 = vshrl.u32 %v969, 16
        %vm975 = vc.u32 %v967, %v971
        %v976 = vsel %vm975, 1, 0
        %v977 = vadd.s32 %v967, %v971
        %v978 = vadd.s32 %v970, %v976
        %vm979 = vc.u32 %v977, %v973
        %v980 = vsel %vm979, 1, 0
        %v981 = vadd.s32 %v977, %v973
        %v982 = vadd.s32 %v978, %v980
        %v983 = vadd.s32 %v982, %v972
        %v984 = vadd.s32 %v983, %v974
        %v985 = vmul.u32 %v940, %v931
        %v986 = vadd.s32 %v962, %v981
        %vm987 = vc.u32 %v962, %v981
        %v988 = vadd.s32 %v984, 1
        %v989 = vsel %vm987, %v988, %v984
        %v990 = vadd.s32 %v985, %v989
        %v991 = vadd.s32 %v990, 536870912
        %v992 = vshrl.u32 %v991, 30
        %v993 = vshll.u32 %v992, 30
        %v994 = vsub.s32 %v990, %v993
        %vm995 = vcmp.lt.s32.totalorder %v994, 0
        %v996 = vsub.s32 0, %v994
        %v997 = vsel %vm995, %v996, %v994
        %v998 = vclz %v997
        %v999 = vsub.s32 %v998, 2
        %vm1000 = vcmp.gt.s32.totalorder 0, %v999
        %v1001 = vsel %vm1000, 0, %v999
        %v1002 = vsub.s32 32, %v1001
        %v1003 = vshll.u32 %v994, %v1001
        %v1004 = vshrl.u32 %v986, %v1002
        %v1005 = vor.u32 %v1003, %v1004
        %v1006 = vsub.s32 4294967266, %v1001
        %v1007 = vadd.s32 %v1006, 127
        %v1008 = vshll.u32 %v1007, 23
        %v1009 = vor.u32 4788187, %v1008
        %v1010 = vand.u32 2147483647, %v1009
        %v1012 = vcvt.s32.f32 %v1005
        %v1013 = vmul.f32 %v1012, %v1010
        %v1014 = vxor.u32 %v1013, 2147483648
        %v1015 = vsel %vm894, %v1014, %v1013
        %v1016 = vsub.s32 4, %v992
        %v1017 = vsel %vm894, %v1016, %v992
        %v1018 = vsel %vm893, %v718, %v1015
        %v1019 = vsel %vm893, 0, %v1017
        %v1020 = vmul.f32 %v1018, %v1018
        %v1021 = vmul.f32 %v1020, -0.001358992
        %v1022 = vadd.f32 %v1021, 0.041655596
        %v1023 = vmul.f32 %v1020, %v1022
        %v1024 = vadd.f32 %v1023, -0.4999988
        %v1025 = vmul.f32 %v1020, %v1024
        %v1026 = vadd.f32 1.0, %v1025
        %v1027 = vmul.f32 %v1018, %v1018
        %v1028 = vmul.f32 %v1027, -0.00019511016
        %v1029 = vadd.f32 %v1028, 0.008332121
        %v1030 = vmul.f32 %v1027, %v1029
        %v1031 = vadd.f32 %v1030, -0.16666654
        %v1032 = vmul.f32 %v1027, %v1031
        %v1033 = vadd.f32 %v1032, 1.0
        %v1034 = vmul.f32 %v1033, %v1018
        %vm1035 = vweird.f32 %v718
        %v1036 = vand.u32 %v1019, 3
        %vm1037 = vcmp.lt.s32.totalorder %v1036, 2
        %vm1038 = vcmp.eq.s32.totalorder %v1036, 0
        %v1039 = vxor.u32 %v1034, 2147483648
        %v1040 = vsel %vm1038, %v1026, %v1039
        %vm1041 = vcmp.eq.s32.totalorder %v1036, 2
        %v1042 = vxor.u32 %v1026, 2147483648
        %v1043 = vsel %vm1041, %v1042, %v1034
        %v1044 = vsel %vm1037, %v1040, %v1043
        %v1045 = vsel %vm1035, nan, %v1044
        %v1046 = vsub.f32 1.0, %v1045
        %v1047 = vmul.f32 %v1046, %v734
        %v1048 = vmul.f32 %v1047, %v734
        %v1049 = vadd.f32 %v1045, %v1048
        %v1050 = vmul.f32 %v1047, %v735
        %v1051 = vmul.f32 %v891, %v736
        %v1052 = vsub.f32 %v1050, %v1051
        %v1053 = vmul.f32 %v1047, %v736
        %v1054 = vmul.f32 %v891, %v735
        %v1055 = vadd.f32 %v1053, %v1054
        %v1056 = vadd.f32 %v1050, %v1051
        %v1057 = vmul.f32 %v1046, %v735
        %v1058 = vmul.f32 %v1057, %v735
        %v1059 = vadd.f32 %v1045, %v1058
        %v1060 = vmul.f32 %v1057, %v736
        %v1061 = vmul.f32 %v891, %v734
        %v1062 = vsub.f32 %v1060, %v1061
        %v1063 = vsub.f32 %v1053, %v1054
        %v1064 = vadd.f32 %v1060, %v1061
        %v1065 = vmul.f32 %v1046, %v736
        %v1066 = vmul.f32 %v1065, %v736
        %v1067 = vadd.f32 %v1045, %v1066
        %v1068 = vperm.slane %v677, 0
        %v1069 = vmul.f32 %v1068, %v1049
        %v1070 = vperm.slane %v686, 0
        %v1071 = vmul.f32 %v1070, %v1056
        %v1072 = vadd.f32 %v1069, %v1071
        %v1073 = vperm.slane %v689, 0
        %v1074 = vmul.f32 %v1073, %v1063
        %v1075 = vadd.f32 %v1072, %v1074
        %1076 = vst [vmem:[%s257] sm:$0xf] %v1075
        %v1077 = vmul.f32 %v1068, %v1052
        %v1078 = vmul.f32 %v1070, %v1059
        %v1079 = vadd.f32 %v1077, %v1078
        %v1080 = vmul.f32 %v1073, %v1064
        %v1081 = vadd.f32 %v1079, %v1080
        %s1082 = scalar_lea.vmem %s257, 4 [#allocation7]
        %1083 = vst [vmem:[%s1082] sm:$0xf] %v1081
        %v1084 = vmul.f32 %v1068, %v1055
        %v1085 = vmul.f32 %v1070, %v1062
        %v1086 = vadd.f32 %v1084, %v1085
        %v1087 = vmul.f32 %v1073, %v1067
        %v1088 = vadd.f32 %v1086, %v1087
        %s1089 = scalar_lea.vmem %s257, 8 [#allocation7]
        %1090 = vst [vmem:[%s1089] sm:$0xf] %v1088
        %v1091 = vperm.slane %v690, 0
        %v1092 = vmul.f32 %v1091, %v1049
        %v1093 = vperm.slane %v693, 0
        %v1094 = vmul.f32 %v1093, %v1056
        %v1095 = vadd.f32 %v1092, %v1094
        %v1096 = vperm.slane %v696, 0
        %v1097 = vmul.f32 %v1096, %v1063
        %v1098 = vadd.f32 %v1095, %v1097
        %s1099 = scalar_lea.vmem %s257, 12 [#allocation7]
        %1100 = vst [vmem:[%s1099] sm:$0xf] %v1098
        %v1101 = vmul.f32 %v1091, %v1052
        %v1102 = vmul.f32 %v1093, %v1059
        %v1103 = vadd.f32 %v1101, %v1102
        %v1104 = vmul.f32 %v1096, %v1064
        %v1105 = vadd.f32 %v1103, %v1104
        %s1106 = scalar_lea.vmem %s257, 16 [#allocation7]
        %1107 = vst [vmem:[%s1106] sm:$0xf] %v1105
        %v1108 = vmul.f32 %v1091, %v1055
        %v1109 = vmul.f32 %v1093, %v1062
        %v1110 = vadd.f32 %v1108, %v1109
        %v1111 = vmul.f32 %v1096, %v1067
        %v1112 = vadd.f32 %v1110, %v1111
        %s1113 = scalar_lea.vmem %s257, 20 [#allocation7]
        %1114 = vst [vmem:[%s1113] sm:$0xf] %v1112
        %v1115 = vperm.slane %v697, 0
        %v1116 = vmul.f32 %v1115, %v1049
        %v1117 = vperm.slane %v698, 0
        %v1118 = vmul.f32 %v1117, %v1056
        %v1119 = vadd.f32 %v1116, %v1118
        %v1120 = vperm.slane %v701, 0
        %v1121 = vmul.f32 %v1120, %v1063
        %v1122 = vadd.f32 %v1119, %v1121
        %s1123 = scalar_lea.vmem %s257, 24 [#allocation7]
        %1124 = vst [vmem:[%s1123] sm:$0xf] %v1122
        %v1125 = vmul.f32 %v1115, %v1052
        %v1126 = vmul.f32 %v1117, %v1059
        %v1127 = vadd.f32 %v1125, %v1126
        %v1128 = vmul.f32 %v1120, %v1064
        %v1129 = vadd.f32 %v1127, %v1128
        %s1130 = scalar_lea.vmem %s257, 28 [#allocation7]
        %1131 = vst [vmem:[%s1130] sm:$0xf] %v1129
        %v1132 = vmul.f32 %v1115, %v1055
        %v1133 = vmul.f32 %v1117, %v1062
        %v1134 = vadd.f32 %v1132, %v1133
        %v1135 = vmul.f32 %v1120, %v1067
        %v1136 = vadd.f32 %v1134, %v1135
        %s1137 = scalar_lea.vmem %s257, 32 [#allocation7]
        %1138 = vst [vmem:[%s1137] sm:$0xf] %v1136
        %s1139 = sand.u32 %s126, 1
        %s1140 = scalar_lea.sflag [#allocation4], %s1139
        %s1141 = sand.u32 %s126, 1
        %s1142 = smul.addr %s1141, 36
        %s1143 = scalar_lea.vmem [#allocation7], %s1142
        // Predicated region
        $region45: #{tpu_custom_call.1} parent=35 // pred_check
          %p1144 = pneg %p136
        $region46: #{tpu_custom_call.1} parent=35 // pred_check_branch
          %1146 = sbr.rel (%p1144) target = $region48
        $region47: #{tpu_custom_call.1} parent=35 // pred_region
          %1148 = vsyncadd %s1140, 0
          %s1149 = smul.addr %s24, 4
          %s1150 = scalar_lea.hbm %s4, %s1149
          %s1151 = sshll.u32 %s1143, 4
          %s1152 = int_to_ptr.vmem [resolvable:$true] %s1151
          %s1153 = sshll.u32 %s1150, 4
          %s1154 = int_to_ptr.hbm [resolvable:$true] %s1153
          %1159 = dma.vmem_to_hbm [thread:$0]  %s1152, 576, %s1154, %s1140, 64, 128, 4
        $region48: #{tpu_custom_call.1} parent=35 // pred_fallthru
          _
      $region36: #{tpu_custom_call.1} parent=5 // pred_fallthru
        _
      %p1160 = scmp.le.s32.totalorder 2, %s19
      // Predicated region
      $region49: #{tpu_custom_call.1} parent=5 // pred_check
        %p1161 = pneg %p1160
      $region50: #{tpu_custom_call.1} parent=5 // pred_check_branch
        %1163 = sbr.rel (%p1161) target = $region52
      $region51: #{tpu_custom_call.1} parent=5 // pred_region
        %s1164 = ssub.s32 %s19, 2
        // Predicated region
        $region53: #{tpu_custom_call.1} parent=51 // pred_check
          %p1165 = pneg %p142
        $region54: #{tpu_custom_call.1} parent=51 // pred_check_branch
          %1167 = sbr.rel (%p1165) target = $region56
        $region55: #{tpu_custom_call.1} parent=51 // pred_region
          %s1168 = sand.u32 %s127, 1
          %s1169 = scalar_lea.sflag [#allocation4], %s1168
          %s1170 = sand.u32 %s127, 1
          %s1171 = smul.addr %s1170, 36
          %s1172 = scalar_lea.vmem [#allocation7], %s1171
          %1174 = dma.done %s1169, 576
        $region56: #{tpu_custom_call.1} parent=51 // pred_fallthru
          _
      $region52: #{tpu_custom_call.1} parent=5 // pred_fallthru
        _
    $region6: #{tpu_custom_call.1} parent=1 // loop_footer
      %s23 = sadd.s32 1, %s19
    $region7: #{tpu_custom_call.1} parent=1 // loop_footer_branch
      %18 = sbr.rel target = $region3
    $region8: #{tpu_custom_call.1} parent=1 // loop_exit
      _
    %1175 = vsyncpa [#allocation3], 1
    %s1176 = scalar_lea.sflag [#allocation3], 1
    %1177 = vsyncpa %s1176, 1
    %1178 = vsyncpa [#allocation6], 1
    %s1179 = scalar_lea.sflag [#allocation6], 1
    %1180 = vsyncpa %s1179, 1
    %1181 = vsyncpa [#allocation4], 1
    %s1182 = scalar_lea.sflag [#allocation4], 1
    %1183 = vsyncpa %s1182, 1

</llo_original>
